<compile_context>
chip_gen: v6e
topology: v6e:2x2x1
jax: 0.10.0
libtpu: 0.0.40
codegen_flags: <defaults>
</compile_context>

<pallas_src>
import functools
import math

import jax
import jax.numpy as jnp
import numpy as np
from jax import lax
from jax.experimental import pallas as pl
from jax.experimental.pallas import tpu as pltpu

_BN_EPS = 1e-5


# ----------------------------------------------------------------------------
# Device / tiling helpers
# ----------------------------------------------------------------------------
def _device_config():
    kind = ""
    try:
        kind = (getattr(jax.devices()[0], "device_kind", "") or "").lower()
    except Exception:
        pass
    if "v7" in kind or "tpu7" in kind:
        # v7x: 64 MiB physical VMEM / TensorCore -> smaller tiles, tighter cap.
        return dict(tok_tile=256, q_tile=256, k_tile=512, vmem_cap=48 << 20)
    # v5e / v6e: 128 MiB VMEM. tk kept at 512 so the f32 softmax temporaries
    # (s, p) never push the flash kernel into compiler spills.
    return dict(tok_tile=512, q_tile=512, k_tile=512, vmem_cap=100 << 20)


def _pick_tile(n, target, align):
    """Largest divisor of n that is <= target and a multiple of `align`;
    falls back to the full dimension (exempt from the (8,128) rule)."""
    t = min(int(target), int(n))
    t -= t % align
    while t >= align:
        if n % t == 0:
            return t
        t -= align
    return int(n)


def _bytes(shape, dtype):
    return int(np.prod(shape)) * jnp.dtype(dtype).itemsize


def _vmem_estimate(io_blocks, scratch=(), temp_bytes=0, headroom=4 << 20):
    """io_blocks: iterable of (shape, dtype, n_buffers); scratch: (shape, dtype)."""
    io = sum(_bytes(s, d) * nb for s, d, nb in io_blocks)
    sc = sum(_bytes(s, d) for s, d in scratch)
    return io + sc + int(temp_bytes) + headroom


def _fit_flash_tiles(N, H, dh, D, tq, tk, store_dtype, score_dtype, cap, sub_align):
    """Shrink (tq, tk) until double-buffered I/O + scratch + softmax temporaries
    fit the per-generation VMEM cap."""

    def est(tq_, tk_):
        io = [((H, tq_, dh), store_dtype, 2),    # q
              ((H, tk_, dh), store_dtype, 2),    # k
              ((H, tk_, dh), store_dtype, 2),    # v
              ((tq_, D), jnp.float32, 2),        # x (residual input)
              ((H, tq_, tk_), score_dtype, 2),   # raw scores out
              ((tq_, D), jnp.float32, 2),        # r1 out
              ((1, 2, D), jnp.float32, 2)]       # BN1 partial stats out
        sc = [((H, tq_, 1), jnp.float32), ((H, tq_, 1), jnp.float32),
              ((H, tq_, dh), jnp.float32)]
        # s, p plus broadcast temporaries live in f32 vregs/VMEM.
        temps = 3 * H * tq_ * tk_ * 4
        return _vmem_estimate(io, sc, temps)

    while est(tq, tk) > cap:
        new_tk = _pick_tile(N, tk // 2, 128) if tk > 128 else tk
        if new_tk < tk:
            tk = new_tk
            continue
        new_tq = _pick_tile(N, tq // 2, sub_align) if tq > sub_align else tq
        if new_tq < tq:
            tq = new_tq
            continue
        break
    return tq, tk


# ----------------------------------------------------------------------------
# Kernels
# ----------------------------------------------------------------------------
def _qkv_proj_kernel(x_ref, w_ref, b_ref, q_ref, k_ref, v_ref, *,
                     num_heads, d_head, compute_dtype):
    """Fused Q|K|V projection for one token tile, written head-major.

    w_ref is the packed (D, 3D) weight (already in compute_dtype) with
    1/sqrt(d_head) pre-folded into the Q columns; outputs are
    (H, ttok, d_head) in the storage dtype (bf16 on the fast path).
    """
    x = x_ref[...].astype(compute_dtype)
    qkv = jnp.dot(x, w_ref[...], preferred_element_type=jnp.float32) + b_ref[...]
    d_model = num_heads * d_head
    for h in range(num_heads):                     # static: head-major relayout
        lo = h * d_head
        q_ref[h, :, :] = qkv[:, lo:lo + d_head].astype(q_ref.dtype)
        k_ref[h, :, :] = qkv[:, d_model + lo:d_model + lo + d_head].astype(k_ref.dtype)
        v_ref[h, :, :] = qkv[:, 2 * d_model + lo:2 * d_model + lo + d_head].astype(v_ref.dtype)


def _flash_attn_kernel(x_ref, q_ref, k_ref, v_ref,
                       scores_ref, r1_ref, stats_ref,
                       m_sc, l_sc, acc_sc, *,
                       num_heads, d_head, approx_reciprocal):
    """Flash-style self-attention over a (query-tile, key-tile) grid.

    Streams the raw (pre-softmax) scores out lane-dense per (qi, ki) tile and,
    on the last key tile, fuses the residual r1 = X + ctx and the BN1 partial
    sum / sum-of-squares statistics (ctx never leaves VMEM).
    """
    ki = pl.program_id(1)

    @pl.when(ki == 0)
    def _():
        m_sc[...] = jnp.full_like(m_sc, -jnp.inf)
        l_sc[...] = jnp.zeros_like(l_sc)
        acc_sc[...] = jnp.zeros_like(acc_sc)

    q = q_ref[...]                                  # (H, tq, dh), pre-scaled
    k = k_ref[...]                                  # (H, tk, dh)
    s = jnp.einsum("hqd,hkd->hqk", q, k,
                   preferred_element_type=jnp.float32)     # (H, tq, tk) f32
    scores_ref[...] = s.astype(scores_ref.dtype)    # raw scaled attention scores

    m_prev = m_sc[...]
    m_new = jnp.maximum(m_prev, jnp.max(s, axis=-1, keepdims=True))
    alpha = jnp.exp(m_prev - m_new)
    p = jnp.exp(s - m_new)
    l_sc[...] = alpha * l_sc[...] + jnp.sum(p, axis=-1, keepdims=True)
    acc_sc[...] = alpha * acc_sc[...] + jnp.einsum(
        "hqk,hkd->hqd", p.astype(v_ref.dtype), v_ref[...],
        preferred_element_type=jnp.float32)
    m_sc[...] = m_new

    @pl.when(ki == pl.num_programs(1) - 1)
    def _():
        inv_l = pl.reciprocal(l_sc[...], approx=approx_reciprocal)
        ctx = acc_sc[...] * inv_l                   # (H, tq, dh) f32
        x = x_ref[...]
        for h in range(num_heads):                  # lane-sliced head merge
            lo = h * d_head
            r1_ref[:, lo:lo + d_head] = x[:, lo:lo + d_head] + ctx[h]
        r1 = r1_ref[...]
        # Per-tile partial BN1 statistics (combined in the wrapper so the qi
        # axis stays "parallel" -> both TensorCores usable on v7x).
        stats_ref[0, 0:1, :] = jnp.sum(r1, axis=0, keepdims=True)
        stats_ref[0, 1:2, :] = jnp.sum(r1 * r1, axis=0, keepdims=True)


def _ffn_kernel(r1_ref, stats1_ref, g1_ref, be1_ref,
                w1_ref, b1_ref, w2_ref, b2_ref,
                r2_ref, stats2_ref, *, compute_dtype):
    """BN1 apply (precomputed batch stats) + FFN + residual; emits per-tile
    BN2 partial statistics."""
    st = stats1_ref[...]
    mean, var = st[0:1, :], st[1:2, :]
    n1 = (r1_ref[...] - mean) * lax.rsqrt(var + _BN_EPS) * g1_ref[...] + be1_ref[...]

    h = jnp.maximum(
        jnp.dot(n1.astype(compute_dtype), w1_ref[...],
                preferred_element_type=jnp.float32) + b1_ref[...], 0.0)
    ff = jnp.dot(h.astype(compute_dtype), w2_ref[...],
                 preferred_element_type=jnp.float32) + b2_ref[...]

    r2 = n1 + ff
    r2_ref[...] = r2
    stats2_ref[0, 0:1, :] = jnp.sum(r2, axis=0, keepdims=True)
    stats2_ref[0, 1:2, :] = jnp.sum(r2 * r2, axis=0, keepdims=True)


def _bn_apply_kernel(r_ref, stats_ref, g_ref, be_ref, o_ref):
    st = stats_ref[...]
    mean, var = st[0:1, :], st[1:2, :]
    o_ref[...] = ((r_ref[...] - mean) * lax.rsqrt(var + _BN_EPS)
                  * g_ref[...] + be_ref[...]).astype(o_ref.dtype)


# ----------------------------------------------------------------------------
# Wrapper
# ----------------------------------------------------------------------------
def encoder_layer_forward(X, params, num_heads, *,
                          compute_dtype=jnp.bfloat16, tiles=None):
    """X: (num_sensed, seq_len, d_model) float32.

    Returns (norm_ffn (num_sensed, seq_len, d_model), attn_scores (H, N, N)),
    N = num_sensed*seq_len, matching TimeSeriesTransformerEncoderLayer.forward.
    compute_dtype controls MXU input precision (f32 accumulation always); on
    the bf16 fast path Q/K/V and the raw scores are stored as bf16 in HBM.
    """
    S, L, D = X.shape
    H = int(num_heads)
    dh = D // H
    N = S * L
    d_ff = params["w1"].shape[1]

    cfg = _device_config()
    exact = jnp.dtype(compute_dtype) == jnp.dtype(jnp.float32)
    store_dtype = jnp.float32 if exact else jnp.dtype(compute_dtype)
    score_dtype = jnp.float32 if exact else jnp.bfloat16
    sub_align = 8 if exact else 16      # bf16 packs 16 rows per sublane tile

    tiles = tiles or {}
    ttok = _pick_tile(N, tiles.get("tok", cfg["tok_tile"]), sub_align)
    tq = _pick_tile(N, tiles.get("tq", cfg["q_tile"]), sub_align)
    tk = _pick_tile(N, tiles.get("tk", cfg["k_tile"]), 128)  # lane-dense scores
    tq, tk = _fit_flash_tiles(N, H, dh, D, tq, tk, store_dtype, score_dtype,
                              cfg["vmem_cap"], sub_align)

    x2d = X.reshape(N, D).astype(jnp.float32)

    # One-time (trace-time) weight packing: Q|K|V fused, 1/sqrt(dh) folded into
    # the Q columns/bias, matmul weights pre-cast to compute_dtype.
    q_scale = 1.0 / math.sqrt(dh)
    w_qkv = jnp.concatenate(
        [params["wq"] * q_scale, params["wk"], params["wv"]], axis=1
    ).astype(compute_dtype)
    b_qkv = jnp.concatenate(
        [params["bq"] * q_scale, params["bk"], params["bv"]], axis=1
    ).astype(jnp.float32)
    w1 = params["w1"].astype(compute_dtype)
    w2 = params["w2"].astype(compute_dtype)

    def const_spec(shape):  # broadcast (constant-block) spec over 1-D grids
        return pl.BlockSpec(shape, lambda i: (0,) * len(shape))

    def cparams(semantics):
        # Never under-set: the cap is always <= physical VMEM per generation.
        return pltpu.CompilerParams(dimension_semantics=semantics,
                                    vmem_limit_bytes=int(cfg["vmem_cap"]))

    # ---- 1. fused Q/K/V projection, head-major outputs ----------------------
    n_tok = N // ttok
    qh, kh, vh = pl.pallas_call(
        functools.partial(_qkv_proj_kernel, num_heads=H, d_head=dh,
                          compute_dtype=compute_dtype),
        grid=(n_tok,),
        in_specs=[pl.BlockSpec((ttok, D), lambda i: (i, 0)),
                  const_spec((D, 3 * D)), const_spec((1, 3 * D))],
        out_specs=[pl.BlockSpec((H, ttok, dh), lambda i: (0, i, 0))] * 3,
        out_shape=[jax.ShapeDtypeStruct((H, N, dh), store_dtype)] * 3,
        compiler_params=cparams(("parallel",)),
    )(x2d, w_qkv, b_qkv)

    # ---- 2. flash attention + fused residual / BN1 partial stats ------------
    nq, nk = N // tq, N // tk
    scores, r1, stats1_parts = pl.pallas_call(
        functools.partial(_flash_attn_kernel, num_heads=H, d_head=dh,
                          approx_reciprocal=not exact),
        grid=(nq, nk),
        in_specs=[pl.BlockSpec((tq, D), lambda qi, ki: (qi, 0)),
                  pl.BlockSpec((H, tq, dh), lambda qi, ki: (0, qi, 0)),
                  pl.BlockSpec((H, tk, dh), lambda qi, ki: (0, ki, 0)),
                  pl.BlockSpec((H, tk, dh), lambda qi, ki: (0, ki, 0))],
        out_specs=[pl.BlockSpec((H, tq, tk), lambda qi, ki: (0, qi, ki)),
                   pl.BlockSpec((tq, D), lambda qi, ki: (qi, 0)),
                   pl.BlockSpec((1, 2, D), lambda qi, ki: (qi, 0, 0))],
        out_shape=[jax.ShapeDtypeStruct((H, N, N), score_dtype),
                   jax.ShapeDtypeStruct((N, D), jnp.float32),
                   jax.ShapeDtypeStruct((nq, 2, D), jnp.float32)],
        scratch_shapes=[pltpu.VMEM((H, tq, 1), jnp.float32),
                        pltpu.VMEM((H, tq, 1), jnp.float32),
                        pltpu.VMEM((H, tq, dh), jnp.float32)],
        compiler_params=cparams(("parallel", "arbitrary")),
    )(x2d, qh, kh, vh)

    def finalize_stats(parts):  # tiny (n_tiles, 2, D) combine done in plain JAX
        total = jnp.sum(parts, axis=0)               # (2, D)
        mean = total[0:1, :] / N
        var = total[1:2, :] / N - mean * mean        # biased variance (BN train)
        return jnp.concatenate([mean, var], axis=0)  # (2, D): [mean; var]

    stats1 = finalize_stats(stats1_parts)

    # ---- 3. BN1 apply + FFN + residual + BN2 partial stats (fully parallel) -
    r2, stats2_parts = pl.pallas_call(
        functools.partial(_ffn_kernel, compute_dtype=compute_dtype),
        grid=(n_tok,),
        in_specs=[pl.BlockSpec((ttok, D), lambda i: (i, 0)),
                  const_spec((2, D)), const_spec((1, D)), const_spec((1, D)),
                  const_spec((D, d_ff)), const_spec((1, d_ff)),
                  const_spec((d_ff, D)), const_spec((1, D))],
        out_specs=[pl.BlockSpec((ttok, D), lambda i: (i, 0)),
                   pl.BlockSpec((1, 2, D), lambda i: (i, 0, 0))],
        out_shape=[jax.ShapeDtypeStruct((N, D), jnp.float32),
                   jax.ShapeDtypeStruct((n_tok, 2, D), jnp.float32)],
        compiler_params=cparams(("parallel",)),
    )(r1, stats1, params["g1"], params["be1"], w1, params["b1"], w2, params["b2"])

    stats2 = finalize_stats(stats2_parts)

    # ---- 4. BN2 apply --------------------------------------------------------
    out2d = pl.pallas_call(
        _bn_apply_kernel,
        grid=(n_tok,),
        in_specs=[pl.BlockSpec((ttok, D), lambda i: (i, 0)),
                  const_spec((2, D)), const_spec((1, D)), const_spec((1, D))],
        out_specs=pl.BlockSpec((ttok, D), lambda i: (i, 0)),
        out_shape=jax.ShapeDtypeStruct((N, D), jnp.float32),
        compiler_params=cparams(("parallel",)),
    )(r2, stats2, params["g2"], params["be2"])

    return out2d.reshape(S, L, D), scores


# ----------------------------------------------------------------------------
# Plain-JAX reference (mirrors the PyTorch forward; eval dropout, batch-stat BN)
# ----------------------------------------------------------------------------
def encoder_layer_reference(X, params, num_heads):
    S, L, D = X.shape
    N = S * L
    dh = D // num_heads
    x = X.reshape(N, D)
    q = x @ params["wq"] + params["bq"]
    k = x @ params["wk"] + params["bk"]
    v = x @ params["wv"] + params["bv"]
    qh = q.reshape(N, num_heads, dh).transpose(1, 0, 2)
    kh = k.reshape(N, num_heads, dh).transpose(1, 0, 2)
    vh = v.reshape(N, num_heads, dh).transpose(1, 0, 2)
    scores = jnp.einsum("hnd,hmd->hnm", qh, kh) / np.sqrt(dh)
    w = jax.nn.softmax(scores, axis=-1)
    ctx = jnp.einsum("hnm,hmd->hnd", w, vh).transpose(1, 0, 2).reshape(N, D)

    def bn(z, gamma, beta):
        mean = jnp.mean(z, axis=0, keepdims=True)
        var = jnp.mean((z - mean) ** 2, axis=0, keepdims=True)
        return (z - mean) / jnp.sqrt(var + _BN_EPS) * gamma + beta

    n1 = bn(x + ctx, params["g1"], params["be1"])
    ff = jnp.maximum(n1 @ params["w1"] + params["b1"], 0.0) @ params["w2"] + params["b2"]
    out = bn(n1 + ff, params["g2"], params["be2"])
    return out.reshape(S, L, D), scores


def init_params(key, d_model, d_ff):
    ks = jax.random.split(key, 10)

    def lin(kw, kb, fan_in, fan_out):
        bound = 1.0 / np.sqrt(fan_in)
        w = jax.random.uniform(kw, (fan_in, fan_out), jnp.float32, -bound, bound)
        b = jax.random.uniform(kb, (1, fan_out), jnp.float32, -bound, bound)
        return w, b

    wq, bq = lin(ks[0], ks[1], d_model, d_model)
    wk, bk = lin(ks[2], ks[3], d_model, d_model)
    wv, bv = lin(ks[4], ks[5], d_model, d_model)
    w1, b1 = lin(ks[6], ks[7], d_model, d_ff)
    w2, b2 = lin(ks[8], ks[9], d_ff, d_model)
    ones = jnp.ones((1, d_model), jnp.float32)
    zeros = jnp.zeros((1, d_model), jnp.float32)
    return dict(wq=wq, bq=bq, wk=wk, bk=bk, wv=wv, bv=bv,
                w1=w1, b1=b1, w2=w2, b2=b2,
                g1=ones, be1=zeros, g2=ones, be2=zeros)


if __name__ == "__main__":
    num_sensed, seq_len, d_model, num_heads, d_ff = 8, 32, 32, 4, 64
    key = jax.random.PRNGKey(0)
    kx, kp = jax.random.split(key)
    X = jax.random.normal(kx, (num_sensed, seq_len, d_model), jnp.float32)
    params = init_params(kp, d_model, d_ff)

    # Small tiles so the test exercises multi-step grids (online softmax across
    # key tiles, parallel query-tile axis, cross-tile BN partial statistics).
    test_tiles = dict(tok=64, tq=64, tk=128)

    ref_out, ref_scores = encoder_layer_reference(X, params, num_heads)

    # f32 MXU path: tight check against the plain-JAX reference.
    out32, sc32 = encoder_layer_forward(X, params, num_heads,
                                        compute_dtype=jnp.float32,
                                        tiles=test_tiles)
    jax.block_until_ready((out32, sc32))
    np.testing.assert_allclose(np.asarray(sc32), np.asarray(ref_scores),
                               rtol=1e-4, atol=1e-4)
    np.testing.assert_allclose(np.asarray(out32), np.asarray(ref_out),
                               rtol=1e-3, atol=1e-3)

    # bf16 fast path: bf16 Q/K/V + bf16 raw scores + approx reciprocal.
    outbf, scbf = encoder_layer_forward(X, params, num_heads,
                                        compute_dtype=jnp.bfloat16,
                                        tiles=test_tiles)
    jax.block_until_ready((outbf, scbf))
    np.testing.assert_allclose(np.asarray(scbf.astype(jnp.float32)),
                               np.asarray(ref_scores), rtol=3e-2, atol=3e-2)
    np.testing.assert_allclose(np.asarray(outbf), np.asarray(ref_out),
                               rtol=5e-2, atol=5e-2)

    print("KERNEL_OK")
</pallas_src>

<mosaic_0001>
module attributes {stable_mosaic.version = 11 : i64} {
  func.func @_qkv_proj_kernel(%arg0: i32, %arg1: memref<64x32xf32, #tpu.memory_space<vmem>>, %arg2: memref<32x96xf32, #tpu.memory_space<vmem>>, %arg3: memref<1x96xf32, #tpu.memory_space<vmem>>, %arg4: memref<4x64x8xf32, #tpu.memory_space<vmem>>, %arg5: memref<4x64x8xf32, #tpu.memory_space<vmem>>, %arg6: memref<4x64x8xf32, #tpu.memory_space<vmem>>) attributes {dimension_semantics = [#tpu.dimension_semantics<parallel>], iteration_bounds = array<i64: 4>, scalar_prefetch = 0 : i64, scratch_operands = 0 : i64, tpu.core_type = #tpu.core_type<tc>, window_params = [{transform_indices = @transform_0, window_bounds = array<i64: 64, 32>}, {pipeline_mode = #tpu.pipeline_mode<synchronous>, transform_indices = @transform_1, window_bounds = array<i64: 32, 96>}, {pipeline_mode = #tpu.pipeline_mode<synchronous>, transform_indices = @transform_2, window_bounds = array<i64: 1, 96>}, {transform_indices = @transform_3, window_bounds = array<i64: 4, 64, 8>}, {transform_indices = @transform_4, window_bounds = array<i64: 4, 64, 8>}, {transform_indices = @transform_5, window_bounds = array<i64: 4, 64, 8>}]} {
    %c0 = arith.constant 0 : index
    %c0_0 = arith.constant 0 : index
    %0 = vector.load %arg1[%c0, %c0_0] : memref<64x32xf32, #tpu.memory_space<vmem>>, vector<64x32xf32>
    %c0_1 = arith.constant 0 : index
    %c0_2 = arith.constant 0 : index
    %1 = vector.load %arg2[%c0_1, %c0_2] : memref<32x96xf32, #tpu.memory_space<vmem>>, vector<32x96xf32>
    %cst = arith.constant dense<0.000000e+00> : vector<64x96xf32>
    %2 = tpu.matmul %0, %1, %cst {dimension_numbers = #tpu.dot_dimension_numbers<[1], [0], [0], [1], [0, 0, 1, 1], [], []>} : vector<64x32xf32>, vector<32x96xf32>, vector<64x96xf32> -> vector<64x96xf32>
    %c0_3 = arith.constant 0 : index
    %c0_4 = arith.constant 0 : index
    %3 = vector.load %arg3[%c0_3, %c0_4] : memref<1x96xf32, #tpu.memory_space<vmem>>, vector<1x96xf32>
    %4 = vector.broadcast %3 : vector<1x96xf32> to vector<64x96xf32>
    %5 = arith.addf %2, %4 : vector<64x96xf32>
    %6 = vector.extract_strided_slice %5 {offsets = [0, 0], sizes = [64, 8], strides = [1, 1]} : vector<64x96xf32> to vector<64x8xf32>
    %c0_5 = arith.constant 0 : index
    %c0_6 = arith.constant 0 : index
    %c0_7 = arith.constant 0 : index
    %7 = vector.load %arg4[%c0_5, %c0_6, %c0_7] : memref<4x64x8xf32, #tpu.memory_space<vmem>>, vector<1x64x8xf32>
    %8 = vector.shape_cast %7 : vector<1x64x8xf32> to vector<64x8xf32>
    %9 = vector.shape_cast %6 : vector<64x8xf32> to vector<1x64x8xf32>
    tpu.vector_store %arg4[%c0_5, %c0_6, %c0_7], %9 {strides = array<i32>} : memref<4x64x8xf32, #tpu.memory_space<vmem>>, vector<1x64x8xf32>,
    %10 = vector.extract_strided_slice %5 {offsets = [0, 32], sizes = [64, 8], strides = [1, 1]} : vector<64x96xf32> to vector<64x8xf32>
    %c0_8 = arith.constant 0 : index
    %c0_9 = arith.constant 0 : index
    %c0_10 = arith.constant 0 : index
    %11 = vector.load %arg5[%c0_8, %c0_9, %c0_10] : memref<4x64x8xf32, #tpu.memory_space<vmem>>, vector<1x64x8xf32>
    %12 = vector.shape_cast %11 : vector<1x64x8xf32> to vector<64x8xf32>
    %13 = vector.shape_cast %10 : vector<64x8xf32> to vector<1x64x8xf32>
    tpu.vector_store %arg5[%c0_8, %c0_9, %c0_10], %13 {strides = array<i32>} : memref<4x64x8xf32, #tpu.memory_space<vmem>>, vector<1x64x8xf32>,
    %14 = vector.extract_strided_slice %5 {offsets = [0, 64], sizes = [64, 8], strides = [1, 1]} : vector<64x96xf32> to vector<64x8xf32>
    %c0_11 = arith.constant 0 : index
    %c0_12 = arith.constant 0 : index
    %c0_13 = arith.constant 0 : index
    %15 = vector.load %arg6[%c0_11, %c0_12, %c0_13] : memref<4x64x8xf32, #tpu.memory_space<vmem>>, vector<1x64x8xf32>
    %16 = vector.shape_cast %15 : vector<1x64x8xf32> to vector<64x8xf32>
    %17 = vector.shape_cast %14 : vector<64x8xf32> to vector<1x64x8xf32>
    tpu.vector_store %arg6[%c0_11, %c0_12, %c0_13], %17 {strides = array<i32>} : memref<4x64x8xf32, #tpu.memory_space<vmem>>, vector<1x64x8xf32>,
    %18 = vector.extract_strided_slice %5 {offsets = [0, 8], sizes = [64, 8], strides = [1, 1]} : vector<64x96xf32> to vector<64x8xf32>
    %c1 = arith.constant 1 : index
    %c0_14 = arith.constant 0 : index
    %c0_15 = arith.constant 0 : index
    %19 = vector.load %arg4[%c1, %c0_14, %c0_15] : memref<4x64x8xf32, #tpu.memory_space<vmem>>, vector<1x64x8xf32>
    %20 = vector.shape_cast %19 : vector<1x64x8xf32> to vector<64x8xf32>
    %21 = vector.shape_cast %18 : vector<64x8xf32> to vector<1x64x8xf32>
    tpu.vector_store %arg4[%c1, %c0_14, %c0_15], %21 {strides = array<i32>} : memref<4x64x8xf32, #tpu.memory_space<vmem>>, vector<1x64x8xf32>,
    %22 = vector.extract_strided_slice %5 {offsets = [0, 40], sizes = [64, 8], strides = [1, 1]} : vector<64x96xf32> to vector<64x8xf32>
    %c1_16 = arith.constant 1 : index
    %c0_17 = arith.constant 0 : index
    %c0_18 = arith.constant 0 : index
    %23 = vector.load %arg5[%c1_16, %c0_17, %c0_18] : memref<4x64x8xf32, #tpu.memory_space<vmem>>, vector<1x64x8xf32>
    %24 = vector.shape_cast %23 : vector<1x64x8xf32> to vector<64x8xf32>
    %25 = vector.shape_cast %22 : vector<64x8xf32> to vector<1x64x8xf32>
    tpu.vector_store %arg5[%c1_16, %c0_17, %c0_18], %25 {strides = array<i32>} : memref<4x64x8xf32, #tpu.memory_space<vmem>>, vector<1x64x8xf32>,
    %26 = vector.extract_strided_slice %5 {offsets = [0, 72], sizes = [64, 8], strides = [1, 1]} : vector<64x96xf32> to vector<64x8xf32>
    %c1_19 = arith.constant 1 : index
    %c0_20 = arith.constant 0 : index
    %c0_21 = arith.constant 0 : index
    %27 = vector.load %arg6[%c1_19, %c0_20, %c0_21] : memref<4x64x8xf32, #tpu.memory_space<vmem>>, vector<1x64x8xf32>
    %28 = vector.shape_cast %27 : vector<1x64x8xf32> to vector<64x8xf32>
    %29 = vector.shape_cast %26 : vector<64x8xf32> to vector<1x64x8xf32>
    tpu.vector_store %arg6[%c1_19, %c0_20, %c0_21], %29 {strides = array<i32>} : memref<4x64x8xf32, #tpu.memory_space<vmem>>, vector<1x64x8xf32>,
    %30 = vector.extract_strided_slice %5 {offsets = [0, 16], sizes = [64, 8], strides = [1, 1]} : vector<64x96xf32> to vector<64x8xf32>
    %c2 = arith.constant 2 : index
    %c0_22 = arith.constant 0 : index
    %c0_23 = arith.constant 0 : index
    %31 = vector.load %arg4[%c2, %c0_22, %c0_23] : memref<4x64x8xf32, #tpu.memory_space<vmem>>, vector<1x64x8xf32>
    %32 = vector.shape_cast %31 : vector<1x64x8xf32> to vector<64x8xf32>
    %33 = vector.shape_cast %30 : vector<64x8xf32> to vector<1x64x8xf32>
    tpu.vector_store %arg4[%c2, %c0_22, %c0_23], %33 {strides = array<i32>} : memref<4x64x8xf32, #tpu.memory_space<vmem>>, vector<1x64x8xf32>,
    %34 = vector.extract_strided_slice %5 {offsets = [0, 48], sizes = [64, 8], strides = [1, 1]} : vector<64x96xf32> to vector<64x8xf32>
    %c2_24 = arith.constant 2 : index
    %c0_25 = arith.constant 0 : index
    %c0_26 = arith.constant 0 : index
    %35 = vector.load %arg5[%c2_24, %c0_25, %c0_26] : memref<4x64x8xf32, #tpu.memory_space<vmem>>, vector<1x64x8xf32>
    %36 = vector.shape_cast %35 : vector<1x64x8xf32> to vector<64x8xf32>
    %37 = vector.shape_cast %34 : vector<64x8xf32> to vector<1x64x8xf32>
    tpu.vector_store %arg5[%c2_24, %c0_25, %c0_26], %37 {strides = array<i32>} : memref<4x64x8xf32, #tpu.memory_space<vmem>>, vector<1x64x8xf32>,
    %38 = vector.extract_strided_slice %5 {offsets = [0, 80], sizes = [64, 8], strides = [1, 1]} : vector<64x96xf32> to vector<64x8xf32>
    %c2_27 = arith.constant 2 : index
    %c0_28 = arith.constant 0 : index
    %c0_29 = arith.constant 0 : index
    %39 = vector.load %arg6[%c2_27, %c0_28, %c0_29] : memref<4x64x8xf32, #tpu.memory_space<vmem>>, vector<1x64x8xf32>
    %40 = vector.shape_cast %39 : vector<1x64x8xf32> to vector<64x8xf32>
    %41 = vector.shape_cast %38 : vector<64x8xf32> to vector<1x64x8xf32>
    tpu.vector_store %arg6[%c2_27, %c0_28, %c0_29], %41 {strides = array<i32>} : memref<4x64x8xf32, #tpu.memory_space<vmem>>, vector<1x64x8xf32>,
    %42 = vector.extract_strided_slice %5 {offsets = [0, 24], sizes = [64, 8], strides = [1, 1]} : vector<64x96xf32> to vector<64x8xf32>
    %c3 = arith.constant 3 : index
    %c0_30 = arith.constant 0 : index
    %c0_31 = arith.constant 0 : index
    %43 = vector.load %arg4[%c3, %c0_30, %c0_31] : memref<4x64x8xf32, #tpu.memory_space<vmem>>, vector<1x64x8xf32>
    %44 = vector.shape_cast %43 : vector<1x64x8xf32> to vector<64x8xf32>
    %45 = vector.shape_cast %42 : vector<64x8xf32> to vector<1x64x8xf32>
    tpu.vector_store %arg4[%c3, %c0_30, %c0_31], %45 {strides = array<i32>} : memref<4x64x8xf32, #tpu.memory_space<vmem>>, vector<1x64x8xf32>,
    %46 = vector.extract_strided_slice %5 {offsets = [0, 56], sizes = [64, 8], strides = [1, 1]} : vector<64x96xf32> to vector<64x8xf32>
    %c3_32 = arith.constant 3 : index
    %c0_33 = arith.constant 0 : index
    %c0_34 = arith.constant 0 : index
    %47 = vector.load %arg5[%c3_32, %c0_33, %c0_34] : memref<4x64x8xf32, #tpu.memory_space<vmem>>, vector<1x64x8xf32>
    %48 = vector.shape_cast %47 : vector<1x64x8xf32> to vector<64x8xf32>
    %49 = vector.shape_cast %46 : vector<64x8xf32> to vector<1x64x8xf32>
    tpu.vector_store %arg5[%c3_32, %c0_33, %c0_34], %49 {strides = array<i32>} : memref<4x64x8xf32, #tpu.memory_space<vmem>>, vector<1x64x8xf32>,
    %50 = vector.extract_strided_slice %5 {offsets = [0, 88], sizes = [64, 8], strides = [1, 1]} : vector<64x96xf32> to vector<64x8xf32>
    %c3_35 = arith.constant 3 : index
    %c0_36 = arith.constant 0 : index
    %c0_37 = arith.constant 0 : index
    %51 = vector.load %arg6[%c3_35, %c0_36, %c0_37] : memref<4x64x8xf32, #tpu.memory_space<vmem>>, vector<1x64x8xf32>
    %52 = vector.shape_cast %51 : vector<1x64x8xf32> to vector<64x8xf32>
    %53 = vector.shape_cast %50 : vector<64x8xf32> to vector<1x64x8xf32>
    tpu.vector_store %arg6[%c3_35, %c0_36, %c0_37], %53 {strides = array<i32>} : memref<4x64x8xf32, #tpu.memory_space<vmem>>, vector<1x64x8xf32>,
    return
  }
  func.func @transform_0(%arg0: i32) -> (i32, i32) {
    %c0_i32 = arith.constant 0 : i32
    %c0_i32_0 = arith.constant 0 : i32
    return %arg0, %c0_i32 : i32, i32
  }
  func.func @transform_1(%arg0: i32) -> (i32, i32) {
    %c0_i32 = arith.constant 0 : i32
    %c0_i32_0 = arith.constant 0 : i32
    %c0_i32_1 = arith.constant 0 : i32
    return %c0_i32, %c0_i32_0 : i32, i32
  }
  func.func @transform_2(%arg0: i32) -> (i32, i32) {
    %c0_i32 = arith.constant 0 : i32
    %c0_i32_0 = arith.constant 0 : i32
    %c0_i32_1 = arith.constant 0 : i32
    return %c0_i32, %c0_i32_0 : i32, i32
  }
  func.func @transform_3(%arg0: i32) -> (i32, i32, i32) {
    %c0_i32 = arith.constant 0 : i32
    %c0_i32_0 = arith.constant 0 : i32
    %c0_i32_1 = arith.constant 0 : i32
    return %c0_i32, %arg0, %c0_i32_0 : i32, i32, i32
  }
  func.func @transform_4(%arg0: i32) -> (i32, i32, i32) {
    %c0_i32 = arith.constant 0 : i32
    %c0_i32_0 = arith.constant 0 : i32
    %c0_i32_1 = arith.constant 0 : i32
    return %c0_i32, %arg0, %c0_i32_0 : i32, i32, i32
  }
  func.func @transform_5(%arg0: i32) -> (i32, i32, i32) {
    %c0_i32 = arith.constant 0 : i32
    %c0_i32_0 = arith.constant 0 : i32
    %c0_i32_1 = arith.constant 0 : i32
    return %c0_i32, %arg0, %c0_i32_0 : i32, i32, i32
  }
}

</mosaic_0001>

<llo_original>
// kernel: tpu_custom_call.1
$region0: #{tpu_custom_call.1}
  #allocation0 [shape = 'u32[]', space=smem, size = 0x4, offset = 0x4, fixed_abs, tag = 'smem constant byte address 0x4 - core index']
  #allocation1 [shape = 'u32[144,128]{1,0:T(1,128)}', space=vmem, size = 0x12000, scoped, tag = 'internal scratch']
  %s0 = inlined_call_operand.vmem [shape: f32[256,32], index: 0, kind: input, shape index: {}]
  %s1 = inlined_call_operand.vmem [shape: f32[32,96], index: 1, kind: input, shape index: {}]
  %s2 = inlined_call_operand.vmem [shape: f32[1,96], index: 2, kind: input, shape index: {}]
  %s3 = inlined_call_operand.vmem [shape: f32[4,256,8], index: 3, kind: output, shape index: {0}]
  %s4 = inlined_call_operand.vmem [shape: f32[4,256,8], index: 4, kind: output, shape index: {1}]
  %s5 = inlined_call_operand.vmem [shape: f32[4,256,8], index: 5, kind: output, shape index: {2}]
  %6 = xla_tuple %s3, %s4, %s5
  %s7 = sld [smem:[#allocation0]]
  $region163: #{tpu_custom_call.1} parent=0
    _
  %s9 = ssub.s32 1, %s7
  %s10 = scalar_select 0, %s9, %s7
  $region1: #{tpu_custom_call.1} parent=0
    #allocation2 [shape = 'u8[262144]{0}', space=vmem, size = 0x40000, scoped, tag = 'output window, operand 0']
    #allocation3 [shape = 'u8[262144]{0}', space=vmem, size = 0x40000, scoped, tag = 'output window, operand 1']
    #allocation4 [shape = 'u8[262144]{0}', space=vmem, size = 0x40000, scoped, tag = 'output window, operand 2']
    loop: start=0, step=1, limit=6
    $region2: #{tpu_custom_call.1} parent=1 // loop_pre_header
      _
    $region3: #{tpu_custom_call.1} parent=1 // loop_header
      %s12 = sphi 0, %s16
      %p13 = scmp.ge.s32.totalorder %s12, 6
      %s22 = sphi 0, %s24
      %s25 = sphi 0, %s22
      %s26 = sphi 0, %s25
      %s42 = sphi 0, %s26
      %s46 = sphi 0, %s46
      %s48 = sphi 0, %s46
      %s49 = sphi 0, %s48
      %s63 = sphi 0, %s49
      %s67 = sphi 0, %s67
      %s69 = sphi 0, %s67
      %s70 = sphi 0, %s69
      %s84 = sphi 0, %s70
      %s90 = sphi 0, %s92
      %s93 = sphi 0, %s90
      %s94 = sphi 0, %s93
      %s110 = sphi 0, %s94
      %s116 = sphi 0, %s118
      %s119 = sphi 0, %s116
      %s120 = sphi 0, %s119
      %s136 = sphi 0, %s120
      %s142 = sphi 0, %s144
      %s145 = sphi 0, %s142
      %s146 = sphi 0, %s145
      %s162 = sphi 0, %s146
    $region4: #{tpu_custom_call.1} parent=1 // loop_header_branch
      %15 = sbr.rel (%p13) target = $region8
    $region5: #{tpu_custom_call.1} parent=1 // loop_body
      %s17 = ssub.s32 %s12, 1
      %s18 = ssub.s32 %s12, 2
      %s19 = sadd.s32 %s12, 1
      %s20 = ssub.s32 %s12, %s19
      %p21 = scmp.eq.s32.totalorder %s20, 0
      %s23 = sadd.s32 %s22, 1
      %s24 = scalar_select %p21, %s22, %s23
      %p27 = pneg %p21
      %p28 = scmp.eq.s32.totalorder %s12, 3
      %p29 = por %p27, %p28
      %p30 = scmp.ne.s32.totalorder %s22, %s25
      %p31 = scmp.eq.s32.totalorder %s12, 0
      %p32 = por %p30, %p31
      %p33 = scmp.ne.s32.totalorder %s22, %s25
      %p34 = scmp.eq.s32.totalorder %s17, 3
      %p35 = por %p33, %p34
      %p36 = scmp.ne.s32.totalorder %s25, %s26
      %p37 = scmp.eq.s32.totalorder %s17, 0
      %p38 = por %p36, %p37
      %p39 = scmp.ne.s32.totalorder %s25, %s26
      %p40 = scmp.eq.s32.totalorder %s18, 3
      %p41 = por %p39, %p40
      %p43 = scmp.ne.s32.totalorder %s26, %s42
      %p44 = scmp.eq.s32.totalorder %s18, 0
      %p45 = por %p43, %p44
      %s47 = sadd.s32 %s46, 1
      %p50 = scmp.eq.s32.totalorder %s12, 3
      %p51 = scmp.ne.s32.totalorder %s46, %s48
      %p52 = scmp.eq.s32.totalorder %s12, 0
      %p53 = por %p51, %p52
      %p54 = scmp.ne.s32.totalorder %s46, %s48
      %p55 = scmp.eq.s32.totalorder %s17, 3
      %p56 = por %p54, %p55
      %p57 = scmp.ne.s32.totalorder %s48, %s49
      %p58 = scmp.eq.s32.totalorder %s17, 0
      %p59 = por %p57, %p58
      %p60 = scmp.ne.s32.totalorder %s48, %s49
      %p61 = scmp.eq.s32.totalorder %s18, 3
      %p62 = por %p60, %p61
      %p64 = scmp.ne.s32.totalorder %s49, %s63
      %p65 = scmp.eq.s32.totalorder %s18, 0
      %p66 = por %p64, %p65
      %s68 = sadd.s32 %s67, 1
      %p71 = scmp.eq.s32.totalorder %s12, 3
      %p72 = scmp.ne.s32.totalorder %s67, %s69
      %p73 = scmp.eq.s32.totalorder %s12, 0
      %p74 = por %p72, %p73
      %p75 = scmp.ne.s32.totalorder %s67, %s69
      %p76 = scmp.eq.s32.totalorder %s17, 3
      %p77 = por %p75, %p76
      %p78 = scmp.ne.s32.totalorder %s69, %s70
      %p79 = scmp.eq.s32.totalorder %s17, 0
      %p80 = por %p78, %p79
      %p81 = scmp.ne.s32.totalorder %s69, %s70
      %p82 = scmp.eq.s32.totalorder %s18, 3
      %p83 = por %p81, %p82
      %p85 = scmp.ne.s32.totalorder %s70, %s84
      %p86 = scmp.eq.s32.totalorder %s18, 0
      %p87 = por %p85, %p86
      %s88 = ssub.s32 %s12, %s19
      %p89 = scmp.eq.s32.totalorder %s88, 0
      %s91 = sadd.s32 %s90, 1
      %s92 = scalar_select %p89, %s90, %s91
      %p95 = pneg %p89
      %p96 = scmp.eq.s32.totalorder %s12, 3
      %p97 = por %p95, %p96
      %p98 = scmp.ne.s32.totalorder %s90, %s93
      %p99 = scmp.eq.s32.totalorder %s12, 0
      %p100 = por %p98, %p99
      %p101 = scmp.ne.s32.totalorder %s90, %s93
      %p102 = scmp.eq.s32.totalorder %s17, 3
      %p103 = por %p101, %p102
      %p104 = scmp.ne.s32.totalorder %s93, %s94
      %p105 = scmp.eq.s32.totalorder %s17, 0
      %p106 = por %p104, %p105
      %p107 = scmp.ne.s32.totalorder %s93, %s94
      %p108 = scmp.eq.s32.totalorder %s18, 3
      %p109 = por %p107, %p108
      %p111 = scmp.ne.s32.totalorder %s94, %s110
      %p112 = scmp.eq.s32.totalorder %s18, 0
      %p113 = por %p111, %p112
      %s114 = ssub.s32 %s12, %s19
      %p115 = scmp.eq.s32.totalorder %s114, 0
      %s117 = sadd.s32 %s116, 1
      %s118 = scalar_select %p115, %s116, %s117
      %p121 = pneg %p115
      %p122 = scmp.eq.s32.totalorder %s12, 3
      %p123 = por %p121, %p122
      %p124 = scmp.ne.s32.totalorder %s116, %s119
      %p125 = scmp.eq.s32.totalorder %s12, 0
      %p126 = por %p124, %p125
      %p127 = scmp.ne.s32.totalorder %s116, %s119
      %p128 = scmp.eq.s32.totalorder %s17, 3
      %p129 = por %p127, %p128
      %p130 = scmp.ne.s32.totalorder %s119, %s120
      %p131 = scmp.eq.s32.totalorder %s17, 0
      %p132 = por %p130, %p131
      %p133 = scmp.ne.s32.totalorder %s119, %s120
      %p134 = scmp.eq.s32.totalorder %s18, 3
      %p135 = por %p133, %p134
      %p137 = scmp.ne.s32.totalorder %s120, %s136
      %p138 = scmp.eq.s32.totalorder %s18, 0
      %p139 = por %p137, %p138
      %s140 = ssub.s32 %s12, %s19
      %p141 = scmp.eq.s32.totalorder %s140, 0
      %s143 = sadd.s32 %s142, 1
      %s144 = scalar_select %p141, %s142, %s143
      %p147 = pneg %p141
      %p148 = scmp.eq.s32.totalorder %s12, 3
      %p149 = por %p147, %p148
      %p150 = scmp.ne.s32.totalorder %s142, %s145
      %p151 = scmp.eq.s32.totalorder %s12, 0
      %p152 = por %p150, %p151
      %p153 = scmp.ne.s32.totalorder %s142, %s145
      %p154 = scmp.eq.s32.totalorder %s17, 3
      %p155 = por %p153, %p154
      %p156 = scmp.ne.s32.totalorder %s145, %s146
      %p157 = scmp.eq.s32.totalorder %s17, 0
      %p158 = por %p156, %p157
      %p159 = scmp.ne.s32.totalorder %s145, %s146
      %p160 = scmp.eq.s32.totalorder %s18, 3
      %p161 = por %p159, %p160
      %p163 = scmp.ne.s32.totalorder %s146, %s162
      %p164 = scmp.eq.s32.totalorder %s18, 0
      %p165 = por %p163, %p164
      %p166 = scmp.le.s32.totalorder 1, %s12
      %p167 = scmp.lt.s32.totalorder %s12, 5
      %p168 = pnand %p166, %p167
      %p169 = pneg %p168
      // Predicated region
      $region9: #{tpu_custom_call.1} parent=5 // pred_check
        _
      $region10: #{tpu_custom_call.1} parent=5 // pred_check_branch
        %171 = sbr.rel (%p168) target = $region12
      $region11: #{tpu_custom_call.1} parent=5 // pred_region
        %s172 = ssub.s32 %s12, 1
        // Predicated region
        $region13: #{tpu_custom_call.1} parent=11 // pred_check
          %p173 = pneg %p59
        $region14: #{tpu_custom_call.1} parent=11 // pred_check_branch
          %175 = sbr.rel (%p173) target = $region16
        $region15: #{tpu_custom_call.1} parent=11 // pred_region
          _
        $region16: #{tpu_custom_call.1} parent=11 // pred_fallthru
          _
        // Predicated region
        $region17: #{tpu_custom_call.1} parent=11 // pred_check
          %p176 = pneg %p80
        $region18: #{tpu_custom_call.1} parent=11 // pred_check_branch
          %178 = sbr.rel (%p176) target = $region20
        $region19: #{tpu_custom_call.1} parent=11 // pred_region
          _
        $region20: #{tpu_custom_call.1} parent=11 // pred_fallthru
          _
      $region12: #{tpu_custom_call.1} parent=5 // pred_fallthru
        _
      %p179 = scmp.lt.s32.totalorder %s12, 4
      // Predicated region
      $region21: #{tpu_custom_call.1} parent=5 // pred_check
        %p180 = pneg %p179
      $region22: #{tpu_custom_call.1} parent=5 // pred_check_branch
        %182 = sbr.rel (%p180) target = $region24
      $region23: #{tpu_custom_call.1} parent=5 // pred_region
        // Predicated region
        $region25: #{tpu_custom_call.1} parent=23 // pred_check
          %p183 = pneg %p32
        $region26: #{tpu_custom_call.1} parent=23 // pred_check_branch
          %185 = sbr.rel (%p183) target = $region28
        $region27: #{tpu_custom_call.1} parent=23 // pred_region
          %s186 = smul.u32 8, %s12
          %p187 = scmp.lt.s32.totalorder %s186, 31
          %s188 = scalar_select %p187, %s186, 31
          %s189 = smul.addr %s188, 8
          %s190 = scalar_lea.vmem %s0, %s189
          %s191 = smul.u32 8, %s12
        $region28: #{tpu_custom_call.1} parent=23 // pred_fallthru
          _
      $region24: #{tpu_custom_call.1} parent=5 // pred_fallthru
        _
      %p192 = scmp.le.s32.totalorder 1, %s12
      %p193 = scmp.lt.s32.totalorder %s12, 5
      %p194 = pnand %p192, %p193
      %p195 = pneg %p194
      // Predicated region
      $region29: #{tpu_custom_call.1} parent=5 // pred_check
        _
      $region30: #{tpu_custom_call.1} parent=5 // pred_check_branch
        %197 = sbr.rel (%p194) target = $region32
      $region31: #{tpu_custom_call.1} parent=5 // pred_region
        %s198 = ssub.s32 %s12, 1
        %s199 = smul.u32 8, %s17
        %p200 = scmp.lt.s32.totalorder %s199, 31
        %s201 = scalar_select %p200, %s199, 31
        %s202 = smul.addr %s201, 8
        %s203 = scalar_lea.vmem %s0, %s202
        %p204 = pneg %p38
        %p205 = pneg %p35
        %p206 = pneg %p59
        %p207 = pneg %p56
        %p208 = pneg %p80
        %p209 = pneg %p77
        %p210 = pneg %p106
        %p211 = pneg %p103
        %s212 = sand.u32 %s93, 1
        %s213 = sand.u32 %s93, 1
        %s214 = smul.addr %s213, 256
        %s215 = scalar_lea.vmem [#allocation2], %s214
        %p216 = pneg %p132
        %p217 = pneg %p129
        %s218 = sand.u32 %s119, 1
        %s219 = sand.u32 %s119, 1
        %s220 = smul.addr %s219, 256
        %s221 = scalar_lea.vmem [#allocation3], %s220
        %p222 = pneg %p158
        %p223 = pneg %p155
        %s224 = sand.u32 %s145, 1
        %s225 = sand.u32 %s145, 1
        %s226 = smul.addr %s225, 256
        %s227 = scalar_lea.vmem [#allocation4], %s226
        %s228 = smul.u32 8, %s17
        %p229 = scmp.lt.s32.totalorder %s228, 31
        %s230 = scalar_select %p229, %s228, 31
        %s231 = smul.addr %s230, 8
        %s232 = scalar_lea.vmem %s0, %s231
        %s233 = smul.u32 8, %s17
        %s234 = smul.u32 8, %s17
        %s235 = smul.u32 8, %s17
        %s236 = smul.u32 8, %s17
        %v237 = vld [vmem:[%s232] sm:$0xff]
        %v238 = vld [vmem:[%s232 + $0x8] sm:$0xff]
        %v239 = vld [vmem:[%s232 + $0x10] sm:$0xff]
        %v240 = vld [vmem:[%s232 + $0x18] sm:$0xff]
        %v241 = vld [vmem:[%s232 + $0x20] sm:$0xff]
        %v242 = vld [vmem:[%s232 + $0x28] sm:$0xff]
        %v243 = vld [vmem:[%s232 + $0x30] sm:$0xff]
        %v244 = vld [vmem:[%s232 + $0x38] sm:$0xff]
        %v245 = vld [vmem:[%s1] sm:$0xff]
        %v246 = vld [vmem:[%s1 + $0x8] sm:$0xff]
        %v247 = vld [vmem:[%s1 + $0x10] sm:$0xff]
        %v248 = vld [vmem:[%s1 + $0x18] sm:$0xff]
        %v249 = vld [vmem:[%s2] sm:$0x1]
        %v251 = vlaneseq
        %v252 = vshrl.u32 %v251, 7
        %v253 = vsub.s32 0, %v252
        %v254 = vrot.slane %v249, %v253
        %vm256 = vcmask 261120
        %v258 = vsel %vm256, %v237, 0
        %v261 = vsel %vm256, %v238, 0
        %v264 = vsel %vm256, %v239, 0
        %v267 = vsel %vm256, %v240, 0
        %v270 = vsel %vm256, %v241, 0
        %v273 = vsel %vm256, %v242, 0
        %v276 = vsel %vm256, %v243, 0
        %v279 = vsel %vm256, %v244, 0
        %281 = vmatprep.subr.mxu0 0.0
        %282 = vmatpush1.msra.mxu0 0.0
        %283 = vmatprep.subr.mxu0 0.0
        %284 = vmatpush1.msra.mxu0 0.0
        %285 = vmatprep.subr.mxu0 0.0
        %286 = vmatpush1.msra.mxu0 0.0
        %287 = vmatprep.subr.mxu0 0.0
        %288 = vmatpush1.msra.mxu0 0.0
        %289 = vmatprep.subr.mxu0 0.0
        %290 = vmatpush1.msra.mxu0 0.0
        %291 = vmatprep.subr.mxu0 0.0
        %292 = vmatpush1.msra.mxu0 0.0
        %293 = vmatprep.subr.mxu0 0.0
        %294 = vmatpush1.msra.mxu0 0.0
        %295 = vmatprep.subr.mxu0 0.0
        %296 = vmatpush1.msra.mxu0 0.0
        %297 = vmatprep.subr.mxu0 0.0
        %298 = vmatpush1.msra.mxu0 0.0
        %299 = vmatprep.subr.mxu0 0.0
        %300 = vmatpush1.msra.mxu0 0.0
        %301 = vmatprep.subr.mxu0 0.0
        %302 = vmatpush1.msra.mxu0 0.0
        %303 = vmatprep.subr.mxu0 0.0
        %304 = vmatpush1.msra.mxu0 0.0
        %305 = vmatprep.subr.mxu0 0.0
        %306 = vmatpush1.msra.mxu0 %v248
        %307 = vmatprep.subr.mxu0 0.0
        %308 = vmatpush1.msra.mxu0 %v247
        %309 = vmatprep.subr.mxu0 0.0
        %310 = vmatpush1.msra.mxu0 %v246
        %311 = vmatprep.subr.mxu0 0.0
        %312 = vmatpush1.msra.mxu0 %v245
        %313 = vmatprep.subr.mxu0 0.0
        %314 = vmatpush2.msra.mxu0 0.0
        %315 = vmatprep.subr.mxu0 0.0
        %316 = vmatpush2.msra.mxu0 0.0
        %317 = vmatprep.subr.mxu0 0.0
        %318 = vmatpush2.msra.mxu0 0.0
        %319 = vmatprep.subr.mxu0 0.0
        %320 = vmatpush2.msra.mxu0 0.0
        %321 = vmatprep.subr.mxu0 0.0
        %322 = vmatpush2.msra.mxu0 0.0
        %323 = vmatprep.subr.mxu0 0.0
        %324 = vmatpush2.msra.mxu0 0.0
        %325 = vmatprep.subr.mxu0 0.0
        %326 = vmatpush2.msra.mxu0 0.0
        %327 = vmatprep.subr.mxu0 0.0
        %328 = vmatpush2.msra.mxu0 0.0
        %329 = vmatprep.subr.mxu0 0.0
        %330 = vmatpush2.msra.mxu0 0.0
        %331 = vmatprep.subr.mxu0 0.0
        %332 = vmatpush2.msra.mxu0 0.0
        %333 = vmatprep.subr.mxu0 0.0
        %334 = vmatpush2.msra.mxu0 0.0
        %335 = vmatprep.subr.mxu0 0.0
        %336 = vmatpush2.msra.mxu0 0.0
        %337 = vmatprep.subr.mxu0 0.0
        %338 = vmatpush2.msra.mxu0 0.0
        %339 = vmatprep.subr.mxu0 0.0
        %340 = vmatpush2.msra.mxu0 0.0
        %341 = vmatprep.subr.mxu0 0.0
        %342 = vmatpush2.msra.mxu0 0.0
        %343 = vmatprep.subr.mxu0 0.0
        %344 = vmatpush2.msra.mxu0 0.0
        %345 = vmatprep.mubr.f32.mxu0 0.0
        %346 = vmatmul.mubr.f32.gmra.mxu0 %v258
        %v347 = vpop.f32.mrf.mxu0
        %v348 = vadd.f32 %v254, %v347
        %v349 = vpop.f32.mrf.mxu0
        %350 = vmatprep.mubr.f32.mxu0 0.0
        %351 = vmatmul.mubr.f32.gmra.mxu0 %v261
        %v352 = vpop.f32.mrf.mxu0
        %v353 = vadd.f32 %v254, %v352
        %v354 = vpop.f32.mrf.mxu0
        %355 = vmatprep.mubr.f32.mxu0 0.0
        %356 = vmatmul.mubr.f32.gmra.mxu0 %v264
        %v357 = vpop.f32.mrf.mxu0
        %v358 = vadd.f32 %v254, %v357
        %v359 = vpop.f32.mrf.mxu0
        %360 = vmatprep.mubr.f32.mxu0 0.0
        %361 = vmatmul.mubr.f32.gmra.mxu0 %v267
        %v362 = vpop.f32.mrf.mxu0
        %v363 = vadd.f32 %v254, %v362
        %v364 = vpop.f32.mrf.mxu0
        %365 = vmatprep.mubr.f32.mxu0 0.0
        %366 = vmatmul.mubr.f32.gmra.mxu0 %v270
        %v367 = vpop.f32.mrf.mxu0
        %v368 = vadd.f32 %v254, %v367
        %v369 = vpop.f32.mrf.mxu0
        %370 = vmatprep.mubr.f32.mxu0 0.0
        %371 = vmatmul.mubr.f32.gmra.mxu0 %v273
        %v372 = vpop.f32.mrf.mxu0
        %v373 = vadd.f32 %v254, %v372
        %v374 = vpop.f32.mrf.mxu0
        %375 = vmatprep.mubr.f32.mxu0 0.0
        %376 = vmatmul.mubr.f32.gmra.mxu0 %v276
        %v377 = vpop.f32.mrf.mxu0
        %v378 = vadd.f32 %v254, %v377
        %v379 = vpop.f32.mrf.mxu0
        %380 = vmatprep.mubr.f32.mxu0 0.0
        %381 = vmatmul.mubr.f32.gmra.mxu0 %v279
        %v382 = vpop.f32.mrf.mxu0
        %v383 = vadd.f32 %v254, %v382
        %v384 = vpop.f32.mrf.mxu0
        %385 = vdwg.mxu0
        %vm386 = vcmask 64512
        %387 = vst.msk [vmem:[%s215] sm:$0xff] %vm386, %v348
        %388 = vst.msk [vmem:[%s215 + $0x8] sm:$0xff] %vm386, %v353
        %389 = vst.msk [vmem:[%s215 + $0x10] sm:$0xff] %vm386, %v358
        %390 = vst.msk [vmem:[%s215 + $0x18] sm:$0xff] %vm386, %v363
        %391 = vst.msk [vmem:[%s215 + $0x20] sm:$0xff] %vm386, %v368
        %392 = vst.msk [vmem:[%s215 + $0x28] sm:$0xff] %vm386, %v373
        %393 = vst.msk [vmem:[%s215 + $0x30] sm:$0xff] %vm386, %v378
        %394 = vst.msk [vmem:[%s215 + $0x38] sm:$0xff] %vm386, %v383
        %403 = vrot.lane.b32.xlu0 %v348, 96
        %v404 = vpop.permute.xlu0 %403
        %405 = vrot.lane.b32.xlu0 %v353, 96
        %v406 = vpop.permute.xlu0 %405
        %407 = vrot.lane.b32.xlu0 %v358, 96
        %v408 = vpop.permute.xlu0 %407
        %409 = vrot.lane.b32.xlu0 %v363, 96
        %v410 = vpop.permute.xlu0 %409
        %411 = vrot.lane.b32.xlu0 %v368, 96
        %v412 = vpop.permute.xlu0 %411
        %413 = vrot.lane.b32.xlu0 %v373, 96
        %v414 = vpop.permute.xlu0 %413
        %415 = vrot.lane.b32.xlu0 %v378, 96
        %v416 = vpop.permute.xlu0 %415
        %417 = vrot.lane.b32.xlu0 %v383, 96
        %v418 = vpop.permute.xlu0 %417
        %427 = vst.msk [vmem:[%s221] sm:$0xff] %vm386, %v404
        %428 = vst.msk [vmem:[%s221 + $0x8] sm:$0xff] %vm386, %v406
        %429 = vst.msk [vmem:[%s221 + $0x10] sm:$0xff] %vm386, %v408
        %430 = vst.msk [vmem:[%s221 + $0x18] sm:$0xff] %vm386, %v410
        %431 = vst.msk [vmem:[%s221 + $0x20] sm:$0xff] %vm386, %v412
        %432 = vst.msk [vmem:[%s221 + $0x28] sm:$0xff] %vm386, %v414
        %433 = vst.msk [vmem:[%s221 + $0x30] sm:$0xff] %vm386, %v416
        %434 = vst.msk [vmem:[%s221 + $0x38] sm:$0xff] %vm386, %v418
        %435 = vrot.lane.b32.xlu0 %v348, 64
        %v436 = vpop.permute.xlu0 %435
        %437 = vrot.lane.b32.xlu0 %v353, 64
        %v438 = vpop.permute.xlu0 %437
        %439 = vrot.lane.b32.xlu0 %v358, 64
        %v440 = vpop.permute.xlu0 %439
        %441 = vrot.lane.b32.xlu0 %v363, 64
        %v442 = vpop.permute.xlu0 %441
        %443 = vrot.lane.b32.xlu0 %v368, 64
        %v444 = vpop.permute.xlu0 %443
        %445 = vrot.lane.b32.xlu0 %v373, 64
        %v446 = vpop.permute.xlu0 %445
        %447 = vrot.lane.b32.xlu0 %v378, 64
        %v448 = vpop.permute.xlu0 %447
        %449 = vrot.lane.b32.xlu0 %v383, 64
        %v450 = vpop.permute.xlu0 %449
        %459 = vst.msk [vmem:[%s227] sm:$0xff] %vm386, %v436
        %460 = vst.msk [vmem:[%s227 + $0x8] sm:$0xff] %vm386, %v438
        %461 = vst.msk [vmem:[%s227 + $0x10] sm:$0xff] %vm386, %v440
        %462 = vst.msk [vmem:[%s227 + $0x18] sm:$0xff] %vm386, %v442
        %463 = vst.msk [vmem:[%s227 + $0x20] sm:$0xff] %vm386, %v444
        %464 = vst.msk [vmem:[%s227 + $0x28] sm:$0xff] %vm386, %v446
        %465 = vst.msk [vmem:[%s227 + $0x30] sm:$0xff] %vm386, %v448
        %466 = vst.msk [vmem:[%s227 + $0x38] sm:$0xff] %vm386, %v450
        %467 = vrot.lane.b32.xlu0 %v348, 120
        %v468 = vpop.permute.xlu0 %467
        %469 = vrot.lane.b32.xlu0 %v353, 120
        %v470 = vpop.permute.xlu0 %469
        %471 = vrot.lane.b32.xlu0 %v358, 120
        %v472 = vpop.permute.xlu0 %471
        %473 = vrot.lane.b32.xlu0 %v363, 120
        %v474 = vpop.permute.xlu0 %473
        %475 = vrot.lane.b32.xlu0 %v368, 120
        %v476 = vpop.permute.xlu0 %475
        %477 = vrot.lane.b32.xlu0 %v373, 120
        %v478 = vpop.permute.xlu0 %477
        %479 = vrot.lane.b32.xlu0 %v378, 120
        %v480 = vpop.permute.xlu0 %479
        %481 = vrot.lane.b32.xlu0 %v383, 120
        %v482 = vpop.permute.xlu0 %481
        %s491 = scalar_lea.vmem %s215, 64 [#allocation2]
        %492 = vst.msk [vmem:[%s491] sm:$0xff] %vm386, %v468
        %493 = vst.msk [vmem:[%s491 + $0x8] sm:$0xff] %vm386, %v470
        %494 = vst.msk [vmem:[%s491 + $0x10] sm:$0xff] %vm386, %v472
        %495 = vst.msk [vmem:[%s491 + $0x18] sm:$0xff] %vm386, %v474
        %496 = vst.msk [vmem:[%s491 + $0x20] sm:$0xff] %vm386, %v476
        %497 = vst.msk [vmem:[%s491 + $0x28] sm:$0xff] %vm386, %v478
        %498 = vst.msk [vmem:[%s491 + $0x30] sm:$0xff] %vm386, %v480
        %499 = vst.msk [vmem:[%s491 + $0x38] sm:$0xff] %vm386, %v482
        %500 = vrot.lane.b32.xlu0 %v348, 88
        %v501 = vpop.permute.xlu0 %500
        %502 = vrot.lane.b32.xlu0 %v353, 88
        %v503 = vpop.permute.xlu0 %502
        %504 = vrot.lane.b32.xlu0 %v358, 88
        %v505 = vpop.permute.xlu0 %504
        %506 = vrot.lane.b32.xlu0 %v363, 88
        %v507 = vpop.permute.xlu0 %506
        %508 = vrot.lane.b32.xlu0 %v368, 88
        %v509 = vpop.permute.xlu0 %508
        %510 = vrot.lane.b32.xlu0 %v373, 88
        %v511 = vpop.permute.xlu0 %510
        %512 = vrot.lane.b32.xlu0 %v378, 88
        %v513 = vpop.permute.xlu0 %512
        %514 = vrot.lane.b32.xlu0 %v383, 88
        %v515 = vpop.permute.xlu0 %514
        %s524 = scalar_lea.vmem %s221, 64 [#allocation3]
        %525 = vst.msk [vmem:[%s524] sm:$0xff] %vm386, %v501
        %526 = vst.msk [vmem:[%s524 + $0x8] sm:$0xff] %vm386, %v503
        %527 = vst.msk [vmem:[%s524 + $0x10] sm:$0xff] %vm386, %v505
        %528 = vst.msk [vmem:[%s524 + $0x18] sm:$0xff] %vm386, %v507
        %529 = vst.msk [vmem:[%s524 + $0x20] sm:$0xff] %vm386, %v509
        %530 = vst.msk [vmem:[%s524 + $0x28] sm:$0xff] %vm386, %v511
        %531 = vst.msk [vmem:[%s524 + $0x30] sm:$0xff] %vm386, %v513
        %532 = vst.msk [vmem:[%s524 + $0x38] sm:$0xff] %vm386, %v515
        %533 = vrot.lane.b32.xlu0 %v348, 56
        %v534 = vpop.permute.xlu0 %533
        %535 = vrot.lane.b32.xlu0 %v353, 56
        %v536 = vpop.permute.xlu0 %535
        %537 = vrot.lane.b32.xlu0 %v358, 56
        %v538 = vpop.permute.xlu0 %537
        %539 = vrot.lane.b32.xlu0 %v363, 56
        %v540 = vpop.permute.xlu0 %539
        %541 = vrot.lane.b32.xlu0 %v368, 56
        %v542 = vpop.permute.xlu0 %541
        %543 = vrot.lane.b32.xlu0 %v373, 56
        %v544 = vpop.permute.xlu0 %543
        %545 = vrot.lane.b32.xlu0 %v378, 56
        %v546 = vpop.permute.xlu0 %545
        %547 = vrot.lane.b32.xlu0 %v383, 56
        %v548 = vpop.permute.xlu0 %547
        %s557 = scalar_lea.vmem %s227, 64 [#allocation4]
        %558 = vst.msk [vmem:[%s557] sm:$0xff] %vm386, %v534
        %559 = vst.msk [vmem:[%s557 + $0x8] sm:$0xff] %vm386, %v536
        %560 = vst.msk [vmem:[%s557 + $0x10] sm:$0xff] %vm386, %v538
        %561 = vst.msk [vmem:[%s557 + $0x18] sm:$0xff] %vm386, %v540
        %562 = vst.msk [vmem:[%s557 + $0x20] sm:$0xff] %vm386, %v542
        %563 = vst.msk [vmem:[%s557 + $0x28] sm:$0xff] %vm386, %v544
        %564 = vst.msk [vmem:[%s557 + $0x30] sm:$0xff] %vm386, %v546
        %565 = vst.msk [vmem:[%s557 + $0x38] sm:$0xff] %vm386, %v548
        %566 = vrot.lane.b32.xlu0 %v348, 112
        %v567 = vpop.permute.xlu0 %566
        %568 = vrot.lane.b32.xlu0 %v353, 112
        %v569 = vpop.permute.xlu0 %568
        %570 = vrot.lane.b32.xlu0 %v358, 112
        %v571 = vpop.permute.xlu0 %570
        %572 = vrot.lane.b32.xlu0 %v363, 112
        %v573 = vpop.permute.xlu0 %572
        %574 = vrot.lane.b32.xlu0 %v368, 112
        %v575 = vpop.permute.xlu0 %574
        %576 = vrot.lane.b32.xlu0 %v373, 112
        %v577 = vpop.permute.xlu0 %576
        %578 = vrot.lane.b32.xlu0 %v378, 112
        %v579 = vpop.permute.xlu0 %578
        %580 = vrot.lane.b32.xlu0 %v383, 112
        %v581 = vpop.permute.xlu0 %580
        %s590 = scalar_lea.vmem %s215, 128 [#allocation2]
        %591 = vst.msk [vmem:[%s590] sm:$0xff] %vm386, %v567
        %592 = vst.msk [vmem:[%s590 + $0x8] sm:$0xff] %vm386, %v569
        %593 = vst.msk [vmem:[%s590 + $0x10] sm:$0xff] %vm386, %v571
        %594 = vst.msk [vmem:[%s590 + $0x18] sm:$0xff] %vm386, %v573
        %595 = vst.msk [vmem:[%s590 + $0x20] sm:$0xff] %vm386, %v575
        %596 = vst.msk [vmem:[%s590 + $0x28] sm:$0xff] %vm386, %v577
        %597 = vst.msk [vmem:[%s590 + $0x30] sm:$0xff] %vm386, %v579
        %598 = vst.msk [vmem:[%s590 + $0x38] sm:$0xff] %vm386, %v581
        %599 = vrot.lane.b32.xlu0 %v348, 80
        %v600 = vpop.permute.xlu0 %599
        %601 = vrot.lane.b32.xlu0 %v353, 80
        %v602 = vpop.permute.xlu0 %601
        %603 = vrot.lane.b32.xlu0 %v358, 80
        %v604 = vpop.permute.xlu0 %603
        %605 = vrot.lane.b32.xlu0 %v363, 80
        %v606 = vpop.permute.xlu0 %605
        %607 = vrot.lane.b32.xlu0 %v368, 80
        %v608 = vpop.permute.xlu0 %607
        %609 = vrot.lane.b32.xlu0 %v373, 80
        %v610 = vpop.permute.xlu0 %609
        %611 = vrot.lane.b32.xlu0 %v378, 80
        %v612 = vpop.permute.xlu0 %611
        %613 = vrot.lane.b32.xlu0 %v383, 80
        %v614 = vpop.permute.xlu0 %613
        %s623 = scalar_lea.vmem %s221, 128 [#allocation3]
        %624 = vst.msk [vmem:[%s623] sm:$0xff] %vm386, %v600
        %625 = vst.msk [vmem:[%s623 + $0x8] sm:$0xff] %vm386, %v602
        %626 = vst.msk [vmem:[%s623 + $0x10] sm:$0xff] %vm386, %v604
        %627 = vst.msk [vmem:[%s623 + $0x18] sm:$0xff] %vm386, %v606
        %628 = vst.msk [vmem:[%s623 + $0x20] sm:$0xff] %vm386, %v608
        %629 = vst.msk [vmem:[%s623 + $0x28] sm:$0xff] %vm386, %v610
        %630 = vst.msk [vmem:[%s623 + $0x30] sm:$0xff] %vm386, %v612
        %631 = vst.msk [vmem:[%s623 + $0x38] sm:$0xff] %vm386, %v614
        %632 = vrot.lane.b32.xlu0 %v348, 48
        %v633 = vpop.permute.xlu0 %632
        %634 = vrot.lane.b32.xlu0 %v353, 48
        %v635 = vpop.permute.xlu0 %634
        %636 = vrot.lane.b32.xlu0 %v358, 48
        %v637 = vpop.permute.xlu0 %636
        %638 = vrot.lane.b32.xlu0 %v363, 48
        %v639 = vpop.permute.xlu0 %638
        %640 = vrot.lane.b32.xlu0 %v368, 48
        %v641 = vpop.permute.xlu0 %640
        %642 = vrot.lane.b32.xlu0 %v373, 48
        %v643 = vpop.permute.xlu0 %642
        %644 = vrot.lane.b32.xlu0 %v378, 48
        %v645 = vpop.permute.xlu0 %644
        %646 = vrot.lane.b32.xlu0 %v383, 48
        %v647 = vpop.permute.xlu0 %646
        %s656 = scalar_lea.vmem %s227, 128 [#allocation4]
        %657 = vst.msk [vmem:[%s656] sm:$0xff] %vm386, %v633
        %658 = vst.msk [vmem:[%s656 + $0x8] sm:$0xff] %vm386, %v635
        %659 = vst.msk [vmem:[%s656 + $0x10] sm:$0xff] %vm386, %v637
        %660 = vst.msk [vmem:[%s656 + $0x18] sm:$0xff] %vm386, %v639
        %661 = vst.msk [vmem:[%s656 + $0x20] sm:$0xff] %vm386, %v641
        %662 = vst.msk [vmem:[%s656 + $0x28] sm:$0xff] %vm386, %v643
        %663 = vst.msk [vmem:[%s656 + $0x30] sm:$0xff] %vm386, %v645
        %664 = vst.msk [vmem:[%s656 + $0x38] sm:$0xff] %vm386, %v647
        %665 = vrot.lane.b32.xlu0 %v348, 104
        %v666 = vpop.permute.xlu0 %665
        %667 = vrot.lane.b32.xlu0 %v353, 104
        %v668 = vpop.permute.xlu0 %667
        %669 = vrot.lane.b32.xlu0 %v358, 104
        %v670 = vpop.permute.xlu0 %669
        %671 = vrot.lane.b32.xlu0 %v363, 104
        %v672 = vpop.permute.xlu0 %671
        %673 = vrot.lane.b32.xlu0 %v368, 104
        %v674 = vpop.permute.xlu0 %673
        %675 = vrot.lane.b32.xlu0 %v373, 104
        %v676 = vpop.permute.xlu0 %675
        %677 = vrot.lane.b32.xlu0 %v378, 104
        %v678 = vpop.permute.xlu0 %677
        %679 = vrot.lane.b32.xlu0 %v383, 104
        %v680 = vpop.permute.xlu0 %679
        %s689 = scalar_lea.vmem %s215, 192 [#allocation2]
        %690 = vst.msk [vmem:[%s689] sm:$0xff] %vm386, %v666
        %691 = vst.msk [vmem:[%s689 + $0x8] sm:$0xff] %vm386, %v668
        %692 = vst.msk [vmem:[%s689 + $0x10] sm:$0xff] %vm386, %v670
        %693 = vst.msk [vmem:[%s689 + $0x18] sm:$0xff] %vm386, %v672
        %694 = vst.msk [vmem:[%s689 + $0x20] sm:$0xff] %vm386, %v674
        %695 = vst.msk [vmem:[%s689 + $0x28] sm:$0xff] %vm386, %v676
        %696 = vst.msk [vmem:[%s689 + $0x30] sm:$0xff] %vm386, %v678
        %697 = vst.msk [vmem:[%s689 + $0x38] sm:$0xff] %vm386, %v680
        %698 = vrot.lane.b32.xlu0 %v348, 72
        %v699 = vpop.permute.xlu0 %698
        %700 = vrot.lane.b32.xlu0 %v353, 72
        %v701 = vpop.permute.xlu0 %700
        %702 = vrot.lane.b32.xlu0 %v358, 72
        %v703 = vpop.permute.xlu0 %702
        %704 = vrot.lane.b32.xlu0 %v363, 72
        %v705 = vpop.permute.xlu0 %704
        %706 = vrot.lane.b32.xlu0 %v368, 72
        %v707 = vpop.permute.xlu0 %706
        %708 = vrot.lane.b32.xlu0 %v373, 72
        %v709 = vpop.permute.xlu0 %708
        %710 = vrot.lane.b32.xlu0 %v378, 72
        %v711 = vpop.permute.xlu0 %710
        %712 = vrot.lane.b32.xlu0 %v383, 72
        %v713 = vpop.permute.xlu0 %712
        %s722 = scalar_lea.vmem %s221, 192 [#allocation3]
        %723 = vst.msk [vmem:[%s722] sm:$0xff] %vm386, %v699
        %724 = vst.msk [vmem:[%s722 + $0x8] sm:$0xff] %vm386, %v701
        %725 = vst.msk [vmem:[%s722 + $0x10] sm:$0xff] %vm386, %v703
        %726 = vst.msk [vmem:[%s722 + $0x18] sm:$0xff] %vm386, %v705
        %727 = vst.msk [vmem:[%s722 + $0x20] sm:$0xff] %vm386, %v707
        %728 = vst.msk [vmem:[%s722 + $0x28] sm:$0xff] %vm386, %v709
        %729 = vst.msk [vmem:[%s722 + $0x30] sm:$0xff] %vm386, %v711
        %730 = vst.msk [vmem:[%s722 + $0x38] sm:$0xff] %vm386, %v713
        %731 = vrot.lane.b32.xlu0 %v348, 40
        %v732 = vpop.permute.xlu0 %731
        %733 = vrot.lane.b32.xlu0 %v353, 40
        %v734 = vpop.permute.xlu0 %733
        %735 = vrot.lane.b32.xlu0 %v358, 40
        %v736 = vpop.permute.xlu0 %735
        %737 = vrot.lane.b32.xlu0 %v363, 40
        %v738 = vpop.permute.xlu0 %737
        %739 = vrot.lane.b32.xlu0 %v368, 40
        %v740 = vpop.permute.xlu0 %739
        %741 = vrot.lane.b32.xlu0 %v373, 40
        %v742 = vpop.permute.xlu0 %741
        %743 = vrot.lane.b32.xlu0 %v378, 40
        %v744 = vpop.permute.xlu0 %743
        %745 = vrot.lane.b32.xlu0 %v383, 40
        %v746 = vpop.permute.xlu0 %745
        %s755 = scalar_lea.vmem %s227, 192 [#allocation4]
        %756 = vst.msk [vmem:[%s755] sm:$0xff] %vm386, %v732
        %757 = vst.msk [vmem:[%s755 + $0x8] sm:$0xff] %vm386, %v734
        %758 = vst.msk [vmem:[%s755 + $0x10] sm:$0xff] %vm386, %v736
        %759 = vst.msk [vmem:[%s755 + $0x18] sm:$0xff] %vm386, %v738
        %760 = vst.msk [vmem:[%s755 + $0x20] sm:$0xff] %vm386, %v740
        %761 = vst.msk [vmem:[%s755 + $0x28] sm:$0xff] %vm386, %v742
        %762 = vst.msk [vmem:[%s755 + $0x30] sm:$0xff] %vm386, %v744
        %763 = vst.msk [vmem:[%s755 + $0x38] sm:$0xff] %vm386, %v746
        %s764 = sand.u32 %s93, 1
        %s765 = sand.u32 %s93, 1
        %s766 = smul.addr %s765, 256
        %s767 = scalar_lea.vmem [#allocation2], %s766
        %s768 = sand.u32 %s119, 1
        %s769 = sand.u32 %s119, 1
        %s770 = smul.addr %s769, 256
        %s771 = scalar_lea.vmem [#allocation3], %s770
        %s772 = sand.u32 %s145, 1
        %s773 = sand.u32 %s145, 1
        %s774 = smul.addr %s773, 256
        %s775 = scalar_lea.vmem [#allocation4], %s774
        // Predicated region
        $region33: #{tpu_custom_call.1} parent=31 // pred_check
          %p776 = pneg %p103
        $region34: #{tpu_custom_call.1} parent=31 // pred_check_branch
          %778 = sbr.rel (%p776) target = $region36
        $region35: #{tpu_custom_call.1} parent=31 // pred_region
          %s779 = smul.u32 8, %s17
          %s780 = smul.addr %s779, 8
          %s781 = scalar_lea.vmem %s3, %s780
          // Predicated region
          $region37: #{tpu_custom_call.1} parent=35 // pred_check
            _
          $region38: #{tpu_custom_call.1} parent=35 // pred_check_branch
            %783 = sbr.rel (0) target = $region40
          $region39: #{tpu_custom_call.1} parent=35 // pred_region
            // Predicated region
            $region41: #{tpu_custom_call.1} parent=39 // pred_check
              _
            $region42: #{tpu_custom_call.1} parent=39 // pred_check_branch
              %785 = sbr.rel (0) target = $region44
            $region43: #{tpu_custom_call.1} parent=39 // pred_region
              // Predicated region
              $region56: #{tpu_custom_call.1} parent=43 // pred_check
                _
              $region57: #{tpu_custom_call.1} parent=43 // pred_check_branch
                %863 = sbr.rel (0) target = $region59
              $region58: #{tpu_custom_call.1} parent=43 // pred_region
                loop: start=0, step=1, limit=1
                $region60: #{tpu_custom_call.1} parent=58 // loop_pre_header
                  _
                $region61: #{tpu_custom_call.1} parent=58 // loop_header
                  %s865 = sphi 0, %s869
                  %p866 = scmp.ge.s32.totalorder %s865, 1
                  %s870 = sphi %s767, %s767
                  %s871 = sphi %s781, %s781
                $region62: #{tpu_custom_call.1} parent=58 // loop_header_branch
                  %868 = sbr.rel (%p866) target = $region66
                $region63: #{tpu_custom_call.1} parent=58 // loop_body
                  %v872 = vld [vmem:[%s870] sm:$0xff]
                  %873 = vst [vmem:[%s871] sm:$0xff] %v872
                  %v874 = vld [vmem:[%s870 + $0x8] sm:$0xff]
                  %875 = vst [vmem:[%s871 + $0x8] sm:$0xff] %v874
                  %v876 = vld [vmem:[%s870 + $0x10] sm:$0xff]
                  %877 = vst [vmem:[%s871 + $0x10] sm:$0xff] %v876
                  %v878 = vld [vmem:[%s870 + $0x18] sm:$0xff]
                  %879 = vst [vmem:[%s871 + $0x18] sm:$0xff] %v878
                  %v880 = vld [vmem:[%s870 + $0x20] sm:$0xff]
                  %881 = vst [vmem:[%s871 + $0x20] sm:$0xff] %v880
                  %v882 = vld [vmem:[%s870 + $0x28] sm:$0xff]
                  %883 = vst [vmem:[%s871 + $0x28] sm:$0xff] %v882
                  %v884 = vld [vmem:[%s870 + $0x30] sm:$0xff]
                  %885 = vst [vmem:[%s871 + $0x30] sm:$0xff] %v884
                  %v886 = vld [vmem:[%s870 + $0x38] sm:$0xff]
                  %887 = vst [vmem:[%s871 + $0x38] sm:$0xff] %v886
                  %v888 = vld [vmem:[%s870 + $0x40] sm:$0xff]
                  %889 = vst [vmem:[%s871 + $0x100] sm:$0xff] %v888
                  %v890 = vld [vmem:[%s870 + $0x48] sm:$0xff]
                  %891 = vst [vmem:[%s871 + $0x108] sm:$0xff] %v890
                  %v892 = vld [vmem:[%s870 + $0x50] sm:$0xff]
                  %893 = vst [vmem:[%s871 + $0x110] sm:$0xff] %v892
                  %v894 = vld [vmem:[%s870 + $0x58] sm:$0xff]
                  %895 = vst [vmem:[%s871 + $0x118] sm:$0xff] %v894
                  %v896 = vld [vmem:[%s870 + $0x60] sm:$0xff]
                  %897 = vst [vmem:[%s871 + $0x120] sm:$0xff] %v896
                  %v898 = vld [vmem:[%s870 + $0x68] sm:$0xff]
                  %899 = vst [vmem:[%s871 + $0x128] sm:$0xff] %v898
                  %v900 = vld [vmem:[%s870 + $0x70] sm:$0xff]
                  %901 = vst [vmem:[%s871 + $0x130] sm:$0xff] %v900
                  %v902 = vld [vmem:[%s870 + $0x78] sm:$0xff]
                  %903 = vst [vmem:[%s871 + $0x138] sm:$0xff] %v902
                  %v904 = vld [vmem:[%s870 + $0x80] sm:$0xff]
                  %905 = vst [vmem:[%s871 + $0x200] sm:$0xff] %v904
                  %v906 = vld [vmem:[%s870 + $0x88] sm:$0xff]
                  %907 = vst [vmem:[%s871 + $0x208] sm:$0xff] %v906
                  %v908 = vld [vmem:[%s870 + $0x90] sm:$0xff]
                  %909 = vst [vmem:[%s871 + $0x210] sm:$0xff] %v908
                  %v910 = vld [vmem:[%s870 + $0x98] sm:$0xff]
                  %911 = vst [vmem:[%s871 + $0x218] sm:$0xff] %v910
                  %v912 = vld [vmem:[%s870 + $0xa0] sm:$0xff]
                  %913 = vst [vmem:[%s871 + $0x220] sm:$0xff] %v912
                  %v914 = vld [vmem:[%s870 + $0xa8] sm:$0xff]
                  %915 = vst [vmem:[%s871 + $0x228] sm:$0xff] %v914
                  %v916 = vld [vmem:[%s870 + $0xb0] sm:$0xff]
                  %917 = vst [vmem:[%s871 + $0x230] sm:$0xff] %v916
                  %v918 = vld [vmem:[%s870 + $0xb8] sm:$0xff]
                  %919 = vst [vmem:[%s871 + $0x238] sm:$0xff] %v918
                  %v920 = vld [vmem:[%s870 + $0xc0] sm:$0xff]
                  %921 = vst [vmem:[%s871 + $0x300] sm:$0xff] %v920
                  %v922 = vld [vmem:[%s870 + $0xc8] sm:$0xff]
                  %923 = vst [vmem:[%s871 + $0x308] sm:$0xff] %v922
                  %v924 = vld [vmem:[%s870 + $0xd0] sm:$0xff]
                  %925 = vst [vmem:[%s871 + $0x310] sm:$0xff] %v924
                  %v926 = vld [vmem:[%s870 + $0xd8] sm:$0xff]
                  %927 = vst [vmem:[%s871 + $0x318] sm:$0xff] %v926
                  %v928 = vld [vmem:[%s870 + $0xe0] sm:$0xff]
                  %929 = vst [vmem:[%s871 + $0x320] sm:$0xff] %v928
                  %v930 = vld [vmem:[%s870 + $0xe8] sm:$0xff]
                  %931 = vst [vmem:[%s871 + $0x328] sm:$0xff] %v930
                  %v932 = vld [vmem:[%s870 + $0xf0] sm:$0xff]
                  %933 = vst [vmem:[%s871 + $0x330] sm:$0xff] %v932
                  %v934 = vld [vmem:[%s870 + $0xf8] sm:$0xff]
                  %935 = vst [vmem:[%s871 + $0x338] sm:$0xff] %v934
                $region64: #{tpu_custom_call.1} parent=58 // loop_footer
                  %s869 = sadd.s32 1, %s865
                $region65: #{tpu_custom_call.1} parent=58 // loop_footer_branch
                  %864 = sbr.rel target = $region61
                $region66: #{tpu_custom_call.1} parent=58 // loop_exit
                  _
              $region59: #{tpu_custom_call.1} parent=43 // pred_fallthru
                _
              // Predicated region
              $region67: #{tpu_custom_call.1} parent=43 // pred_check
                _
              $region68: #{tpu_custom_call.1} parent=43 // pred_check_branch
                %937 = sbr.rel target = $region70
              $region69: #{tpu_custom_call.1} parent=43 // pred_region
                _
              $region70: #{tpu_custom_call.1} parent=43 // pred_fallthru
                _
            $region44: #{tpu_custom_call.1} parent=39 // pred_fallthru
              _
            // Predicated region
            $region45: #{tpu_custom_call.1} parent=39 // pred_check
              _
            $region46: #{tpu_custom_call.1} parent=39 // pred_check_branch
              %787 = sbr.rel target = $region48
            $region47: #{tpu_custom_call.1} parent=39 // pred_region
              %s789 = ssub.s32 256, 1
              loop: start=0, step=1, limit=1
              $region49: #{tpu_custom_call.1} parent=47 // loop_pre_header
                _
              $region50: #{tpu_custom_call.1} parent=47 // loop_header
                %s791 = sphi 0, %s795
                %p792 = scmp.ge.s32.totalorder %s791, 1
                %s796 = sphi %s767, %s767
                %s797 = sphi %s781, %s781
              $region51: #{tpu_custom_call.1} parent=47 // loop_header_branch
                %794 = sbr.rel (%p792) target = $region55
              $region52: #{tpu_custom_call.1} parent=47 // loop_body
                %v798 = vld [vmem:[%s796] sm:%s789]
                %799 = vst [vmem:[%s797] sm:%s789] %v798
                %v800 = vld [vmem:[%s796 + $0x8] sm:%s789]
                %801 = vst [vmem:[%s797 + $0x8] sm:%s789] %v800
                %v802 = vld [vmem:[%s796 + $0x10] sm:%s789]
                %803 = vst [vmem:[%s797 + $0x10] sm:%s789] %v802
                %v804 = vld [vmem:[%s796 + $0x18] sm:%s789]
                %805 = vst [vmem:[%s797 + $0x18] sm:%s789] %v804
                %v806 = vld [vmem:[%s796 + $0x20] sm:%s789]
                %807 = vst [vmem:[%s797 + $0x20] sm:%s789] %v806
                %v808 = vld [vmem:[%s796 + $0x28] sm:%s789]
                %809 = vst [vmem:[%s797 + $0x28] sm:%s789] %v808
                %v810 = vld [vmem:[%s796 + $0x30] sm:%s789]
                %811 = vst [vmem:[%s797 + $0x30] sm:%s789] %v810
                %v812 = vld [vmem:[%s796 + $0x38] sm:%s789]
                %813 = vst [vmem:[%s797 + $0x38] sm:%s789] %v812
                %v814 = vld [vmem:[%s796 + $0x40] sm:%s789]
                %815 = vst [vmem:[%s797 + $0x100] sm:%s789] %v814
                %v816 = vld [vmem:[%s796 + $0x48] sm:%s789]
                %817 = vst [vmem:[%s797 + $0x108] sm:%s789] %v816
                %v818 = vld [vmem:[%s796 + $0x50] sm:%s789]
                %819 = vst [vmem:[%s797 + $0x110] sm:%s789] %v818
                %v820 = vld [vmem:[%s796 + $0x58] sm:%s789]
                %821 = vst [vmem:[%s797 + $0x118] sm:%s789] %v820
                %v822 = vld [vmem:[%s796 + $0x60] sm:%s789]
                %823 = vst [vmem:[%s797 + $0x120] sm:%s789] %v822
                %v824 = vld [vmem:[%s796 + $0x68] sm:%s789]
                %825 = vst [vmem:[%s797 + $0x128] sm:%s789] %v824
                %v826 = vld [vmem:[%s796 + $0x70] sm:%s789]
                %827 = vst [vmem:[%s797 + $0x130] sm:%s789] %v826
                %v828 = vld [vmem:[%s796 + $0x78] sm:%s789]
                %829 = vst [vmem:[%s797 + $0x138] sm:%s789] %v828
                %v830 = vld [vmem:[%s796 + $0x80] sm:%s789]
                %831 = vst [vmem:[%s797 + $0x200] sm:%s789] %v830
                %v832 = vld [vmem:[%s796 + $0x88] sm:%s789]
                %833 = vst [vmem:[%s797 + $0x208] sm:%s789] %v832
                %v834 = vld [vmem:[%s796 + $0x90] sm:%s789]
                %835 = vst [vmem:[%s797 + $0x210] sm:%s789] %v834
                %v836 = vld [vmem:[%s796 + $0x98] sm:%s789]
                %837 = vst [vmem:[%s797 + $0x218] sm:%s789] %v836
                %v838 = vld [vmem:[%s796 + $0xa0] sm:%s789]
                %839 = vst [vmem:[%s797 + $0x220] sm:%s789] %v838
                %v840 = vld [vmem:[%s796 + $0xa8] sm:%s789]
                %841 = vst [vmem:[%s797 + $0x228] sm:%s789] %v840
                %v842 = vld [vmem:[%s796 + $0xb0] sm:%s789]
                %843 = vst [vmem:[%s797 + $0x230] sm:%s789] %v842
                %v844 = vld [vmem:[%s796 + $0xb8] sm:%s789]
                %845 = vst [vmem:[%s797 + $0x238] sm:%s789] %v844
                %v846 = vld [vmem:[%s796 + $0xc0] sm:%s789]
                %847 = vst [vmem:[%s797 + $0x300] sm:%s789] %v846
                %v848 = vld [vmem:[%s796 + $0xc8] sm:%s789]
                %849 = vst [vmem:[%s797 + $0x308] sm:%s789] %v848
                %v850 = vld [vmem:[%s796 + $0xd0] sm:%s789]
                %851 = vst [vmem:[%s797 + $0x310] sm:%s789] %v850
                %v852 = vld [vmem:[%s796 + $0xd8] sm:%s789]
                %853 = vst [vmem:[%s797 + $0x318] sm:%s789] %v852
                %v854 = vld [vmem:[%s796 + $0xe0] sm:%s789]
                %855 = vst [vmem:[%s797 + $0x320] sm:%s789] %v854
                %v856 = vld [vmem:[%s796 + $0xe8] sm:%s789]
                %857 = vst [vmem:[%s797 + $0x328] sm:%s789] %v856
                %v858 = vld [vmem:[%s796 + $0xf0] sm:%s789]
                %859 = vst [vmem:[%s797 + $0x330] sm:%s789] %v858
                %v860 = vld [vmem:[%s796 + $0xf8] sm:%s789]
                %861 = vst [vmem:[%s797 + $0x338] sm:%s789] %v860
              $region53: #{tpu_custom_call.1} parent=47 // loop_footer
                %s795 = sadd.s32 1, %s791
              $region54: #{tpu_custom_call.1} parent=47 // loop_footer_branch
                %790 = sbr.rel target = $region50
              $region55: #{tpu_custom_call.1} parent=47 // loop_exit
                _
            $region48: #{tpu_custom_call.1} parent=39 // pred_fallthru
              _
          $region40: #{tpu_custom_call.1} parent=35 // pred_fallthru
            _
          %938 = vnop
        $region36: #{tpu_custom_call.1} parent=31 // pred_fallthru
          _
        // Predicated region
        $region71: #{tpu_custom_call.1} parent=31 // pred_check
          %p939 = pneg %p129
        $region72: #{tpu_custom_call.1} parent=31 // pred_check_branch
          %941 = sbr.rel (%p939) target = $region74
        $region73: #{tpu_custom_call.1} parent=31 // pred_region
          %s942 = smul.u32 8, %s17
          %s943 = smul.addr %s942, 8
          %s944 = scalar_lea.vmem %s4, %s943
          // Predicated region
          $region75: #{tpu_custom_call.1} parent=73 // pred_check
            _
          $region76: #{tpu_custom_call.1} parent=73 // pred_check_branch
            %946 = sbr.rel (0) target = $region78
          $region77: #{tpu_custom_call.1} parent=73 // pred_region
            // Predicated region
            $region79: #{tpu_custom_call.1} parent=77 // pred_check
              _
            $region80: #{tpu_custom_call.1} parent=77 // pred_check_branch
              %948 = sbr.rel (0) target = $region82
            $region81: #{tpu_custom_call.1} parent=77 // pred_region
              // Predicated region
              $region94: #{tpu_custom_call.1} parent=81 // pred_check
                _
              $region95: #{tpu_custom_call.1} parent=81 // pred_check_branch
                %1026 = sbr.rel (0) target = $region97
              $region96: #{tpu_custom_call.1} parent=81 // pred_region
                loop: start=0, step=1, limit=1
                $region98: #{tpu_custom_call.1} parent=96 // loop_pre_header
                  _
                $region99: #{tpu_custom_call.1} parent=96 // loop_header
                  %s1028 = sphi 0, %s1032
                  %p1029 = scmp.ge.s32.totalorder %s1028, 1
                  %s1033 = sphi %s771, %s771
                  %s1034 = sphi %s944, %s944
                $region100: #{tpu_custom_call.1} parent=96 // loop_header_branch
                  %1031 = sbr.rel (%p1029) target = $region104
                $region101: #{tpu_custom_call.1} parent=96 // loop_body
                  %v1035 = vld [vmem:[%s1033] sm:$0xff]
                  %1036 = vst [vmem:[%s1034] sm:$0xff] %v1035
                  %v1037 = vld [vmem:[%s1033 + $0x8] sm:$0xff]
                  %1038 = vst [vmem:[%s1034 + $0x8] sm:$0xff] %v1037
                  %v1039 = vld [vmem:[%s1033 + $0x10] sm:$0xff]
                  %1040 = vst [vmem:[%s1034 + $0x10] sm:$0xff] %v1039
                  %v1041 = vld [vmem:[%s1033 + $0x18] sm:$0xff]
                  %1042 = vst [vmem:[%s1034 + $0x18] sm:$0xff] %v1041
                  %v1043 = vld [vmem:[%s1033 + $0x20] sm:$0xff]
                  %1044 = vst [vmem:[%s1034 + $0x20] sm:$0xff] %v1043
                  %v1045 = vld [vmem:[%s1033 + $0x28] sm:$0xff]
                  %1046 = vst [vmem:[%s1034 + $0x28] sm:$0xff] %v1045
                  %v1047 = vld [vmem:[%s1033 + $0x30] sm:$0xff]
                  %1048 = vst [vmem:[%s1034 + $0x30] sm:$0xff] %v1047
                  %v1049 = vld [vmem:[%s1033 + $0x38] sm:$0xff]
                  %1050 = vst [vmem:[%s1034 + $0x38] sm:$0xff] %v1049
                  %v1051 = vld [vmem:[%s1033 + $0x40] sm:$0xff]
                  %1052 = vst [vmem:[%s1034 + $0x100] sm:$0xff] %v1051
                  %v1053 = vld [vmem:[%s1033 + $0x48] sm:$0xff]
                  %1054 = vst [vmem:[%s1034 + $0x108] sm:$0xff] %v1053
                  %v1055 = vld [vmem:[%s1033 + $0x50] sm:$0xff]
                  %1056 = vst [vmem:[%s1034 + $0x110] sm:$0xff] %v1055
                  %v1057 = vld [vmem:[%s1033 + $0x58] sm:$0xff]
                  %1058 = vst [vmem:[%s1034 + $0x118] sm:$0xff] %v1057
                  %v1059 = vld [vmem:[%s1033 + $0x60] sm:$0xff]
                  %1060 = vst [vmem:[%s1034 + $0x120] sm:$0xff] %v1059
                  %v1061 = vld [vmem:[%s1033 + $0x68] sm:$0xff]
                  %1062 = vst [vmem:[%s1034 + $0x128] sm:$0xff] %v1061
                  %v1063 = vld [vmem:[%s1033 + $0x70] sm:$0xff]
                  %1064 = vst [vmem:[%s1034 + $0x130] sm:$0xff] %v1063
                  %v1065 = vld [vmem:[%s1033 + $0x78] sm:$0xff]
                  %1066 = vst [vmem:[%s1034 + $0x138] sm:$0xff] %v1065
                  %v1067 = vld [vmem:[%s1033 + $0x80] sm:$0xff]
                  %1068 = vst [vmem:[%s1034 + $0x200] sm:$0xff] %v1067
                  %v1069 = vld [vmem:[%s1033 + $0x88] sm:$0xff]
                  %1070 = vst [vmem:[%s1034 + $0x208] sm:$0xff] %v1069
                  %v1071 = vld [vmem:[%s1033 + $0x90] sm:$0xff]
                  %1072 = vst [vmem:[%s1034 + $0x210] sm:$0xff] %v1071
                  %v1073 = vld [vmem:[%s1033 + $0x98] sm:$0xff]
                  %1074 = vst [vmem:[%s1034 + $0x218] sm:$0xff] %v1073
                  %v1075 = vld [vmem:[%s1033 + $0xa0] sm:$0xff]
                  %1076 = vst [vmem:[%s1034 + $0x220] sm:$0xff] %v1075
                  %v1077 = vld [vmem:[%s1033 + $0xa8] sm:$0xff]
                  %1078 = vst [vmem:[%s1034 + $0x228] sm:$0xff] %v1077
                  %v1079 = vld [vmem:[%s1033 + $0xb0] sm:$0xff]
                  %1080 = vst [vmem:[%s1034 + $0x230] sm:$0xff] %v1079
                  %v1081 = vld [vmem:[%s1033 + $0xb8] sm:$0xff]
                  %1082 = vst [vmem:[%s1034 + $0x238] sm:$0xff] %v1081
                  %v1083 = vld [vmem:[%s1033 + $0xc0] sm:$0xff]
                  %1084 = vst [vmem:[%s1034 + $0x300] sm:$0xff] %v1083
                  %v1085 = vld [vmem:[%s1033 + $0xc8] sm:$0xff]
                  %1086 = vst [vmem:[%s1034 + $0x308] sm:$0xff] %v1085
                  %v1087 = vld [vmem:[%s1033 + $0xd0] sm:$0xff]
                  %1088 = vst [vmem:[%s1034 + $0x310] sm:$0xff] %v1087
                  %v1089 = vld [vmem:[%s1033 + $0xd8] sm:$0xff]
                  %1090 = vst [vmem:[%s1034 + $0x318] sm:$0xff] %v1089
                  %v1091 = vld [vmem:[%s1033 + $0xe0] sm:$0xff]
                  %1092 = vst [vmem:[%s1034 + $0x320] sm:$0xff] %v1091
                  %v1093 = vld [vmem:[%s1033 + $0xe8] sm:$0xff]
                  %1094 = vst [vmem:[%s1034 + $0x328] sm:$0xff] %v1093
                  %v1095 = vld [vmem:[%s1033 + $0xf0] sm:$0xff]
                  %1096 = vst [vmem:[%s1034 + $0x330] sm:$0xff] %v1095
                  %v1097 = vld [vmem:[%s1033 + $0xf8] sm:$0xff]
                  %1098 = vst [vmem:[%s1034 + $0x338] sm:$0xff] %v1097
                $region102: #{tpu_custom_call.1} parent=96 // loop_footer
                  %s1032 = sadd.s32 1, %s1028
                $region103: #{tpu_custom_call.1} parent=96 // loop_footer_branch
                  %1027 = sbr.rel target = $region99
                $region104: #{tpu_custom_call.1} parent=96 // loop_exit
                  _
              $region97: #{tpu_custom_call.1} parent=81 // pred_fallthru
                _
              // Predicated region
              $region105: #{tpu_custom_call.1} parent=81 // pred_check
                _
              $region106: #{tpu_custom_call.1} parent=81 // pred_check_branch
                %1100 = sbr.rel target = $region108
              $region107: #{tpu_custom_call.1} parent=81 // pred_region
                _
              $region108: #{tpu_custom_call.1} parent=81 // pred_fallthru
                _
            $region82: #{tpu_custom_call.1} parent=77 // pred_fallthru
              _
            // Predicated region
            $region83: #{tpu_custom_call.1} parent=77 // pred_check
              _
            $region84: #{tpu_custom_call.1} parent=77 // pred_check_branch
              %950 = sbr.rel target = $region86
            $region85: #{tpu_custom_call.1} parent=77 // pred_region
              %s952 = ssub.s32 256, 1
              loop: start=0, step=1, limit=1
              $region87: #{tpu_custom_call.1} parent=85 // loop_pre_header
                _
              $region88: #{tpu_custom_call.1} parent=85 // loop_header
                %s954 = sphi 0, %s958
                %p955 = scmp.ge.s32.totalorder %s954, 1
                %s959 = sphi %s771, %s771
                %s960 = sphi %s944, %s944
              $region89: #{tpu_custom_call.1} parent=85 // loop_header_branch
                %957 = sbr.rel (%p955) target = $region93
              $region90: #{tpu_custom_call.1} parent=85 // loop_body
                %v961 = vld [vmem:[%s959] sm:%s952]
                %962 = vst [vmem:[%s960] sm:%s952] %v961
                %v963 = vld [vmem:[%s959 + $0x8] sm:%s952]
                %964 = vst [vmem:[%s960 + $0x8] sm:%s952] %v963
                %v965 = vld [vmem:[%s959 + $0x10] sm:%s952]
                %966 = vst [vmem:[%s960 + $0x10] sm:%s952] %v965
                %v967 = vld [vmem:[%s959 + $0x18] sm:%s952]
                %968 = vst [vmem:[%s960 + $0x18] sm:%s952] %v967
                %v969 = vld [vmem:[%s959 + $0x20] sm:%s952]
                %970 = vst [vmem:[%s960 + $0x20] sm:%s952] %v969
                %v971 = vld [vmem:[%s959 + $0x28] sm:%s952]
                %972 = vst [vmem:[%s960 + $0x28] sm:%s952] %v971
                %v973 = vld [vmem:[%s959 + $0x30] sm:%s952]
                %974 = vst [vmem:[%s960 + $0x30] sm:%s952] %v973
                %v975 = vld [vmem:[%s959 + $0x38] sm:%s952]
                %976 = vst [vmem:[%s960 + $0x38] sm:%s952] %v975
                %v977 = vld [vmem:[%s959 + $0x40] sm:%s952]
                %978 = vst [vmem:[%s960 + $0x100] sm:%s952] %v977
                %v979 = vld [vmem:[%s959 + $0x48] sm:%s952]
                %980 = vst [vmem:[%s960 + $0x108] sm:%s952] %v979
                %v981 = vld [vmem:[%s959 + $0x50] sm:%s952]
                %982 = vst [vmem:[%s960 + $0x110] sm:%s952] %v981
                %v983 = vld [vmem:[%s959 + $0x58] sm:%s952]
                %984 = vst [vmem:[%s960 + $0x118] sm:%s952] %v983
                %v985 = vld [vmem:[%s959 + $0x60] sm:%s952]
                %986 = vst [vmem:[%s960 + $0x120] sm:%s952] %v985
                %v987 = vld [vmem:[%s959 + $0x68] sm:%s952]
                %988 = vst [vmem:[%s960 + $0x128] sm:%s952] %v987
                %v989 = vld [vmem:[%s959 + $0x70] sm:%s952]
                %990 = vst [vmem:[%s960 + $0x130] sm:%s952] %v989
                %v991 = vld [vmem:[%s959 + $0x78] sm:%s952]
                %992 = vst [vmem:[%s960 + $0x138] sm:%s952] %v991
                %v993 = vld [vmem:[%s959 + $0x80] sm:%s952]
                %994 = vst [vmem:[%s960 + $0x200] sm:%s952] %v993
                %v995 = vld [vmem:[%s959 + $0x88] sm:%s952]
                %996 = vst [vmem:[%s960 + $0x208] sm:%s952] %v995
                %v997 = vld [vmem:[%s959 + $0x90] sm:%s952]
                %998 = vst [vmem:[%s960 + $0x210] sm:%s952] %v997
                %v999 = vld [vmem:[%s959 + $0x98] sm:%s952]
                %1000 = vst [vmem:[%s960 + $0x218] sm:%s952] %v999
                %v1001 = vld [vmem:[%s959 + $0xa0] sm:%s952]
                %1002 = vst [vmem:[%s960 + $0x220] sm:%s952] %v1001
                %v1003 = vld [vmem:[%s959 + $0xa8] sm:%s952]
                %1004 = vst [vmem:[%s960 + $0x228] sm:%s952] %v1003
                %v1005 = vld [vmem:[%s959 + $0xb0] sm:%s952]
                %1006 = vst [vmem:[%s960 + $0x230] sm:%s952] %v1005
                %v1007 = vld [vmem:[%s959 + $0xb8] sm:%s952]
                %1008 = vst [vmem:[%s960 + $0x238] sm:%s952] %v1007
                %v1009 = vld [vmem:[%s959 + $0xc0] sm:%s952]
                %1010 = vst [vmem:[%s960 + $0x300] sm:%s952] %v1009
                %v1011 = vld [vmem:[%s959 + $0xc8] sm:%s952]
                %1012 = vst [vmem:[%s960 + $0x308] sm:%s952] %v1011
                %v1013 = vld [vmem:[%s959 + $0xd0] sm:%s952]
                %1014 = vst [vmem:[%s960 + $0x310] sm:%s952] %v1013
                %v1015 = vld [vmem:[%s959 + $0xd8] sm:%s952]
                %1016 = vst [vmem:[%s960 + $0x318] sm:%s952] %v1015
                %v1017 = vld [vmem:[%s959 + $0xe0] sm:%s952]
                %1018 = vst [vmem:[%s960 + $0x320] sm:%s952] %v1017
                %v1019 = vld [vmem:[%s959 + $0xe8] sm:%s952]
                %1020 = vst [vmem:[%s960 + $0x328] sm:%s952] %v1019
                %v1021 = vld [vmem:[%s959 + $0xf0] sm:%s952]
                %1022 = vst [vmem:[%s960 + $0x330] sm:%s952] %v1021
                %v1023 = vld [vmem:[%s959 + $0xf8] sm:%s952]
                %1024 = vst [vmem:[%s960 + $0x338] sm:%s952] %v1023
              $region91: #{tpu_custom_call.1} parent=85 // loop_footer
                %s958 = sadd.s32 1, %s954
              $region92: #{tpu_custom_call.1} parent=85 // loop_footer_branch
                %953 = sbr.rel target = $region88
              $region93: #{tpu_custom_call.1} parent=85 // loop_exit
                _
            $region86: #{tpu_custom_call.1} parent=77 // pred_fallthru
              _
          $region78: #{tpu_custom_call.1} parent=73 // pred_fallthru
            _
          %1101 = vnop
        $region74: #{tpu_custom_call.1} parent=31 // pred_fallthru
          _
        // Predicated region
        $region109: #{tpu_custom_call.1} parent=31 // pred_check
          %p1102 = pneg %p155
        $region110: #{tpu_custom_call.1} parent=31 // pred_check_branch
          %1104 = sbr.rel (%p1102) target = $region112
        $region111: #{tpu_custom_call.1} parent=31 // pred_region
          %s1105 = smul.u32 8, %s17
          %s1106 = smul.addr %s1105, 8
          %s1107 = scalar_lea.vmem %s5, %s1106
          // Predicated region
          $region113: #{tpu_custom_call.1} parent=111 // pred_check
            _
          $region114: #{tpu_custom_call.1} parent=111 // pred_check_branch
            %1109 = sbr.rel (0) target = $region116
          $region115: #{tpu_custom_call.1} parent=111 // pred_region
            // Predicated region
            $region117: #{tpu_custom_call.1} parent=115 // pred_check
              _
            $region118: #{tpu_custom_call.1} parent=115 // pred_check_branch
              %1111 = sbr.rel (0) target = $region120
            $region119: #{tpu_custom_call.1} parent=115 // pred_region
              // Predicated region
              $region132: #{tpu_custom_call.1} parent=119 // pred_check
                _
              $region133: #{tpu_custom_call.1} parent=119 // pred_check_branch
                %1189 = sbr.rel (0) target = $region135
              $region134: #{tpu_custom_call.1} parent=119 // pred_region
                loop: start=0, step=1, limit=1
                $region136: #{tpu_custom_call.1} parent=134 // loop_pre_header
                  _
                $region137: #{tpu_custom_call.1} parent=134 // loop_header
                  %s1191 = sphi 0, %s1195
                  %p1192 = scmp.ge.s32.totalorder %s1191, 1
                  %s1196 = sphi %s775, %s775
                  %s1197 = sphi %s1107, %s1107
                $region138: #{tpu_custom_call.1} parent=134 // loop_header_branch
                  %1194 = sbr.rel (%p1192) target = $region142
                $region139: #{tpu_custom_call.1} parent=134 // loop_body
                  %v1198 = vld [vmem:[%s1196] sm:$0xff]
                  %1199 = vst [vmem:[%s1197] sm:$0xff] %v1198
                  %v1200 = vld [vmem:[%s1196 + $0x8] sm:$0xff]
                  %1201 = vst [vmem:[%s1197 + $0x8] sm:$0xff] %v1200
                  %v1202 = vld [vmem:[%s1196 + $0x10] sm:$0xff]
                  %1203 = vst [vmem:[%s1197 + $0x10] sm:$0xff] %v1202
                  %v1204 = vld [vmem:[%s1196 + $0x18] sm:$0xff]
                  %1205 = vst [vmem:[%s1197 + $0x18] sm:$0xff] %v1204
                  %v1206 = vld [vmem:[%s1196 + $0x20] sm:$0xff]
                  %1207 = vst [vmem:[%s1197 + $0x20] sm:$0xff] %v1206
                  %v1208 = vld [vmem:[%s1196 + $0x28] sm:$0xff]
                  %1209 = vst [vmem:[%s1197 + $0x28] sm:$0xff] %v1208
                  %v1210 = vld [vmem:[%s1196 + $0x30] sm:$0xff]
                  %1211 = vst [vmem:[%s1197 + $0x30] sm:$0xff] %v1210
                  %v1212 = vld [vmem:[%s1196 + $0x38] sm:$0xff]
                  %1213 = vst [vmem:[%s1197 + $0x38] sm:$0xff] %v1212
                  %v1214 = vld [vmem:[%s1196 + $0x40] sm:$0xff]
                  %1215 = vst [vmem:[%s1197 + $0x100] sm:$0xff] %v1214
                  %v1216 = vld [vmem:[%s1196 + $0x48] sm:$0xff]
                  %1217 = vst [vmem:[%s1197 + $0x108] sm:$0xff] %v1216
                  %v1218 = vld [vmem:[%s1196 + $0x50] sm:$0xff]
                  %1219 = vst [vmem:[%s1197 + $0x110] sm:$0xff] %v1218
                  %v1220 = vld [vmem:[%s1196 + $0x58] sm:$0xff]
                  %1221 = vst [vmem:[%s1197 + $0x118] sm:$0xff] %v1220
                  %v1222 = vld [vmem:[%s1196 + $0x60] sm:$0xff]
                  %1223 = vst [vmem:[%s1197 + $0x120] sm:$0xff] %v1222
                  %v1224 = vld [vmem:[%s1196 + $0x68] sm:$0xff]
                  %1225 = vst [vmem:[%s1197 + $0x128] sm:$0xff] %v1224
                  %v1226 = vld [vmem:[%s1196 + $0x70] sm:$0xff]
                  %1227 = vst [vmem:[%s1197 + $0x130] sm:$0xff] %v1226
                  %v1228 = vld [vmem:[%s1196 + $0x78] sm:$0xff]
                  %1229 = vst [vmem:[%s1197 + $0x138] sm:$0xff] %v1228
                  %v1230 = vld [vmem:[%s1196 + $0x80] sm:$0xff]
                  %1231 = vst [vmem:[%s1197 + $0x200] sm:$0xff] %v1230
                  %v1232 = vld [vmem:[%s1196 + $0x88] sm:$0xff]
                  %1233 = vst [vmem:[%s1197 + $0x208] sm:$0xff] %v1232
                  %v1234 = vld [vmem:[%s1196 + $0x90] sm:$0xff]
                  %1235 = vst [vmem:[%s1197 + $0x210] sm:$0xff] %v1234
                  %v1236 = vld [vmem:[%s1196 + $0x98] sm:$0xff]
                  %1237 = vst [vmem:[%s1197 + $0x218] sm:$0xff] %v1236
                  %v1238 = vld [vmem:[%s1196 + $0xa0] sm:$0xff]
                  %1239 = vst [vmem:[%s1197 + $0x220] sm:$0xff] %v1238
                  %v1240 = vld [vmem:[%s1196 + $0xa8] sm:$0xff]
                  %1241 = vst [vmem:[%s1197 + $0x228] sm:$0xff] %v1240
                  %v1242 = vld [vmem:[%s1196 + $0xb0] sm:$0xff]
                  %1243 = vst [vmem:[%s1197 + $0x230] sm:$0xff] %v1242
                  %v1244 = vld [vmem:[%s1196 + $0xb8] sm:$0xff]
                  %1245 = vst [vmem:[%s1197 + $0x238] sm:$0xff] %v1244
                  %v1246 = vld [vmem:[%s1196 + $0xc0] sm:$0xff]
                  %1247 = vst [vmem:[%s1197 + $0x300] sm:$0xff] %v1246
                  %v1248 = vld [vmem:[%s1196 + $0xc8] sm:$0xff]
                  %1249 = vst [vmem:[%s1197 + $0x308] sm:$0xff] %v1248
                  %v1250 = vld [vmem:[%s1196 + $0xd0] sm:$0xff]
                  %1251 = vst [vmem:[%s1197 + $0x310] sm:$0xff] %v1250
                  %v1252 = vld [vmem:[%s1196 + $0xd8] sm:$0xff]
                  %1253 = vst [vmem:[%s1197 + $0x318] sm:$0xff] %v1252
                  %v1254 = vld [vmem:[%s1196 + $0xe0] sm:$0xff]
                  %1255 = vst [vmem:[%s1197 + $0x320] sm:$0xff] %v1254
                  %v1256 = vld [vmem:[%s1196 + $0xe8] sm:$0xff]
                  %1257 = vst [vmem:[%s1197 + $0x328] sm:$0xff] %v1256
                  %v1258 = vld [vmem:[%s1196 + $0xf0] sm:$0xff]
                  %1259 = vst [vmem:[%s1197 + $0x330] sm:$0xff] %v1258
                  %v1260 = vld [vmem:[%s1196 + $0xf8] sm:$0xff]
                  %1261 = vst [vmem:[%s1197 + $0x338] sm:$0xff] %v1260
                $region140: #{tpu_custom_call.1} parent=134 // loop_footer
                  %s1195 = sadd.s32 1, %s1191
                $region141: #{tpu_custom_call.1} parent=134 // loop_footer_branch
                  %1190 = sbr.rel target = $region137
                $region142: #{tpu_custom_call.1} parent=134 // loop_exit
                  _
              $region135: #{tpu_custom_call.1} parent=119 // pred_fallthru
                _
              // Predicated region
              $region143: #{tpu_custom_call.1} parent=119 // pred_check
                _
              $region144: #{tpu_custom_call.1} parent=119 // pred_check_branch
                %1263 = sbr.rel target = $region146
              $region145: #{tpu_custom_call.1} parent=119 // pred_region
                _
              $region146: #{tpu_custom_call.1} parent=119 // pred_fallthru
                _
            $region120: #{tpu_custom_call.1} parent=115 // pred_fallthru
              _
            // Predicated region
            $region121: #{tpu_custom_call.1} parent=115 // pred_check
              _
            $region122: #{tpu_custom_call.1} parent=115 // pred_check_branch
              %1113 = sbr.rel target = $region124
            $region123: #{tpu_custom_call.1} parent=115 // pred_region
              %s1115 = ssub.s32 256, 1
              loop: start=0, step=1, limit=1
              $region125: #{tpu_custom_call.1} parent=123 // loop_pre_header
                _
              $region126: #{tpu_custom_call.1} parent=123 // loop_header
                %s1117 = sphi 0, %s1121
                %p1118 = scmp.ge.s32.totalorder %s1117, 1
                %s1122 = sphi %s775, %s775
                %s1123 = sphi %s1107, %s1107
              $region127: #{tpu_custom_call.1} parent=123 // loop_header_branch
                %1120 = sbr.rel (%p1118) target = $region131
              $region128: #{tpu_custom_call.1} parent=123 // loop_body
                %v1124 = vld [vmem:[%s1122] sm:%s1115]
                %1125 = vst [vmem:[%s1123] sm:%s1115] %v1124
                %v1126 = vld [vmem:[%s1122 + $0x8] sm:%s1115]
                %1127 = vst [vmem:[%s1123 + $0x8] sm:%s1115] %v1126
                %v1128 = vld [vmem:[%s1122 + $0x10] sm:%s1115]
                %1129 = vst [vmem:[%s1123 + $0x10] sm:%s1115] %v1128
                %v1130 = vld [vmem:[%s1122 + $0x18] sm:%s1115]
                %1131 = vst [vmem:[%s1123 + $0x18] sm:%s1115] %v1130
                %v1132 = vld [vmem:[%s1122 + $0x20] sm:%s1115]
                %1133 = vst [vmem:[%s1123 + $0x20] sm:%s1115] %v1132
                %v1134 = vld [vmem:[%s1122 + $0x28] sm:%s1115]
                %1135 = vst [vmem:[%s1123 + $0x28] sm:%s1115] %v1134
                %v1136 = vld [vmem:[%s1122 + $0x30] sm:%s1115]
                %1137 = vst [vmem:[%s1123 + $0x30] sm:%s1115] %v1136
                %v1138 = vld [vmem:[%s1122 + $0x38] sm:%s1115]
                %1139 = vst [vmem:[%s1123 + $0x38] sm:%s1115] %v1138
                %v1140 = vld [vmem:[%s1122 + $0x40] sm:%s1115]
                %1141 = vst [vmem:[%s1123 + $0x100] sm:%s1115] %v1140
                %v1142 = vld [vmem:[%s1122 + $0x48] sm:%s1115]
                %1143 = vst [vmem:[%s1123 + $0x108] sm:%s1115] %v1142
                %v1144 = vld [vmem:[%s1122 + $0x50] sm:%s1115]
                %1145 = vst [vmem:[%s1123 + $0x110] sm:%s1115] %v1144
                %v1146 = vld [vmem:[%s1122 + $0x58] sm:%s1115]
                %1147 = vst [vmem:[%s1123 + $0x118] sm:%s1115] %v1146
                %v1148 = vld [vmem:[%s1122 + $0x60] sm:%s1115]
                %1149 = vst [vmem:[%s1123 + $0x120] sm:%s1115] %v1148
                %v1150 = vld [vmem:[%s1122 + $0x68] sm:%s1115]
                %1151 = vst [vmem:[%s1123 + $0x128] sm:%s1115] %v1150
                %v1152 = vld [vmem:[%s1122 + $0x70] sm:%s1115]
                %1153 = vst [vmem:[%s1123 + $0x130] sm:%s1115] %v1152
                %v1154 = vld [vmem:[%s1122 + $0x78] sm:%s1115]
                %1155 = vst [vmem:[%s1123 + $0x138] sm:%s1115] %v1154
                %v1156 = vld [vmem:[%s1122 + $0x80] sm:%s1115]
                %1157 = vst [vmem:[%s1123 + $0x200] sm:%s1115] %v1156
                %v1158 = vld [vmem:[%s1122 + $0x88] sm:%s1115]
                %1159 = vst [vmem:[%s1123 + $0x208] sm:%s1115] %v1158
                %v1160 = vld [vmem:[%s1122 + $0x90] sm:%s1115]
                %1161 = vst [vmem:[%s1123 + $0x210] sm:%s1115] %v1160
                %v1162 = vld [vmem:[%s1122 + $0x98] sm:%s1115]
                %1163 = vst [vmem:[%s1123 + $0x218] sm:%s1115] %v1162
                %v1164 = vld [vmem:[%s1122 + $0xa0] sm:%s1115]
                %1165 = vst [vmem:[%s1123 + $0x220] sm:%s1115] %v1164
                %v1166 = vld [vmem:[%s1122 + $0xa8] sm:%s1115]
                %1167 = vst [vmem:[%s1123 + $0x228] sm:%s1115] %v1166
                %v1168 = vld [vmem:[%s1122 + $0xb0] sm:%s1115]
                %1169 = vst [vmem:[%s1123 + $0x230] sm:%s1115] %v1168
                %v1170 = vld [vmem:[%s1122 + $0xb8] sm:%s1115]
                %1171 = vst [vmem:[%s1123 + $0x238] sm:%s1115] %v1170
                %v1172 = vld [vmem:[%s1122 + $0xc0] sm:%s1115]
                %1173 = vst [vmem:[%s1123 + $0x300] sm:%s1115] %v1172
                %v1174 = vld [vmem:[%s1122 + $0xc8] sm:%s1115]
                %1175 = vst [vmem:[%s1123 + $0x308] sm:%s1115] %v1174
                %v1176 = vld [vmem:[%s1122 + $0xd0] sm:%s1115]
                %1177 = vst [vmem:[%s1123 + $0x310] sm:%s1115] %v1176
                %v1178 = vld [vmem:[%s1122 + $0xd8] sm:%s1115]
                %1179 = vst [vmem:[%s1123 + $0x318] sm:%s1115] %v1178
                %v1180 = vld [vmem:[%s1122 + $0xe0] sm:%s1115]
                %1181 = vst [vmem:[%s1123 + $0x320] sm:%s1115] %v1180
                %v1182 = vld [vmem:[%s1122 + $0xe8] sm:%s1115]
                %1183 = vst [vmem:[%s1123 + $0x328] sm:%s1115] %v1182
                %v1184 = vld [vmem:[%s1122 + $0xf0] sm:%s1115]
                %1185 = vst [vmem:[%s1123 + $0x330] sm:%s1115] %v1184
                %v1186 = vld [vmem:[%s1122 + $0xf8] sm:%s1115]
                %1187 = vst [vmem:[%s1123 + $0x338] sm:%s1115] %v1186
              $region129: #{tpu_custom_call.1} parent=123 // loop_footer
                %s1121 = sadd.s32 1, %s1117
              $region130: #{tpu_custom_call.1} parent=123 // loop_footer_branch
                %1116 = sbr.rel target = $region126
              $region131: #{tpu_custom_call.1} parent=123 // loop_exit
                _
            $region124: #{tpu_custom_call.1} parent=115 // pred_fallthru
              _
          $region116: #{tpu_custom_call.1} parent=111 // pred_fallthru
            _
          %1264 = vnop
        $region112: #{tpu_custom_call.1} parent=31 // pred_fallthru
          _
      $region32: #{tpu_custom_call.1} parent=5 // pred_fallthru
        _
      %p1265 = scmp.le.s32.totalorder 2, %s12
      // Predicated region
      $region147: #{tpu_custom_call.1} parent=5 // pred_check
        %p1266 = pneg %p1265
      $region148: #{tpu_custom_call.1} parent=5 // pred_check_branch
        %1268 = sbr.rel (%p1266) target = $region150
      $region149: #{tpu_custom_call.1} parent=5 // pred_region
        %s1269 = ssub.s32 %s12, 2
        // Predicated region
        $region151: #{tpu_custom_call.1} parent=149 // pred_check
          %p1270 = pneg %p109
        $region152: #{tpu_custom_call.1} parent=149 // pred_check_branch
          %1272 = sbr.rel (%p1270) target = $region154
        $region153: #{tpu_custom_call.1} parent=149 // pred_region
          %s1273 = sand.u32 %s94, 1
          %s1274 = sand.u32 %s94, 1
          %s1275 = smul.addr %s1274, 256
          %s1276 = scalar_lea.vmem [#allocation2], %s1275
        $region154: #{tpu_custom_call.1} parent=149 // pred_fallthru
          _
        // Predicated region
        $region155: #{tpu_custom_call.1} parent=149 // pred_check
          %p1277 = pneg %p135
        $region156: #{tpu_custom_call.1} parent=149 // pred_check_branch
          %1279 = sbr.rel (%p1277) target = $region158
        $region157: #{tpu_custom_call.1} parent=149 // pred_region
          %s1280 = sand.u32 %s120, 1
          %s1281 = sand.u32 %s120, 1
          %s1282 = smul.addr %s1281, 256
          %s1283 = scalar_lea.vmem [#allocation3], %s1282
        $region158: #{tpu_custom_call.1} parent=149 // pred_fallthru
          _
        // Predicated region
        $region159: #{tpu_custom_call.1} parent=149 // pred_check
          %p1284 = pneg %p161
        $region160: #{tpu_custom_call.1} parent=149 // pred_check_branch
          %1286 = sbr.rel (%p1284) target = $region162
        $region161: #{tpu_custom_call.1} parent=149 // pred_region
          %s1287 = sand.u32 %s146, 1
          %s1288 = sand.u32 %s146, 1
          %s1289 = smul.addr %s1288, 256
          %s1290 = scalar_lea.vmem [#allocation4], %s1289
        $region162: #{tpu_custom_call.1} parent=149 // pred_fallthru
          _
      $region150: #{tpu_custom_call.1} parent=5 // pred_fallthru
        _
    $region6: #{tpu_custom_call.1} parent=1 // loop_footer
      %s16 = sadd.s32 1, %s12
    $region7: #{tpu_custom_call.1} parent=1 // loop_footer_branch
      %11 = sbr.rel target = $region3
    $region8: #{tpu_custom_call.1} parent=1 // loop_exit
      _

</llo_original>
